<compile_context>
chip_gen: v7x
topology: tpu7x:2x2x1
jax: 0.10.0
libtpu: 0.0.40
codegen_flags: <defaults>
</compile_context>

<pallas_src>
import functools
import math

import jax
import jax.numpy as jnp
from jax.experimental import pallas as pl
from jax.experimental.pallas import tpu as pltpu

GRID_SIZE = 5
SPLINE_ORDER = 3

# Default tile sizes for the general tiled path (clamped per problem).
TILE_B = 256      # batch tile (sublane axis); raised for weight-stream reuse (v5e)
TILE_IN = 256     # input-feature tile (K-reduction tile), multiple of 128
TILE_OUT = 256    # output-feature tile (lane axis of y), multiple of 128

FEAT_CACHE_BUDGET = 16 * 1024 * 1024   # cap on the per-batch-tile feature cache


def _round_up(x, m):
    return (x + m - 1) // m * m


def _bspline_prescale(grid_size, spline_order):
    """Constant folded into the packed spline weights (denominator product)."""
    if spline_order == 3:
        return 1.0 / 6.0
    h = 2.0 / grid_size
    return 1.0 / (math.factorial(spline_order) * (h ** spline_order))


# ----------------------------------------------------------------------------
# In-kernel featurization helpers (traced inside kernel bodies)
# ----------------------------------------------------------------------------
def _silu(x):
    # exp + approx reciprocal both route to the EUP slot (free vs VALU).
    return x * pl.reciprocal(1.0 + jnp.exp(-x), approx=True)


def _cubic_bases_unnormalized(x, grid_size, spline_order):
    """Uniform-grid cubic B-spline bases, scaled by 6 (1/6 folded into weights).

    Only 4 bases are nonzero at any x; evaluate the 4 cubic pieces of the
    fractional knot position and select per basis by the knot-interval index.
    """
    coef = grid_size + spline_order
    h = 2.0 / grid_size
    inv_h = grid_size / 2.0
    k0 = -spline_order * h - 1.0                 # leftmost (extended) knot

    s = (x - k0) * inv_h                          # position in knot units
    j = jnp.floor(s)                              # knot-interval index (float)
    t = s - j                                     # fractional position in [0,1)
    t2 = t * t
    t3 = t2 * t
    p0 = t3                                       # basis in its 1st support interval
    p1 = -3.0 * t3 + 3.0 * t2 + 3.0 * t + 1.0     # 2nd
    p2 = 3.0 * t3 - 6.0 * t2 + 4.0                # 3rd
    omt = 1.0 - t
    p3 = omt * omt * omt                          # 4th (last)

    bases = []
    for m in range(coef):
        fm = float(m)
        bm = jnp.where(j == fm, p0,
             jnp.where(j == fm + 1.0, p1,
             jnp.where(j == fm + 2.0, p2,
             jnp.where(j == fm + 3.0, p3, 0.0))))
        bases.append(bm)
    # x outside the extended knot range gives j outside [0, coef+3] -> all zero,
    # matching the half-open finite-knot Cox-de-Boor recursion.
    return bases


def _coxdeboor_bases_unnormalized(x, grid_size, spline_order):
    """Generic fallback (spline_order != 3): Cox-de-Boor with the uniform
    1/(k*h) denominators dropped (folded into the packed weights)."""
    h = 2.0 / grid_size
    n_knots = grid_size + 2 * spline_order + 1
    knots = [(j - spline_order) * h - 1.0 for j in range(n_knots)]
    bases = [jnp.where((x >= knots[j]) & (x < knots[j + 1]), 1.0, 0.0)
             for j in range(n_knots - 1)]
    for k in range(1, spline_order + 1):
        bases = [(x - knots[j]) * bases[j] + (knots[j + k + 1] - x) * bases[j + 1]
                 for j in range(len(bases) - 1)]
    return bases


def _bspline_bases(x, grid_size, spline_order):
    if spline_order == 3:
        return _cubic_bases_unnormalized(x, grid_size, spline_order)
    return _coxdeboor_bases_unnormalized(x, grid_size, spline_order)


# ----------------------------------------------------------------------------
# Fused-stack kernel (small models): whole layer stack in one pallas_call,
# activations stay on-chip, weights unpadded as (COEF+1, IN, OUT) bf16 blocks.
# ----------------------------------------------------------------------------
def _kan_stack_kernel(x_ref, *rest, grid_size, spline_order, num_layers):
    w_refs = rest[:num_layers]
    out_ref = rest[num_layers]

    h = x_ref[...]
    for li in range(num_layers):
        w = w_refs[li]
        wdt = w.dtype
        silu = _silu(h)
        bases = _bspline_bases(h, grid_size, spline_order)
        # (COEF+1) small dots with K = layer input width; leading-axis static
        # indexing of the 3-D weight block avoids any unaligned concatenation.
        acc = jnp.dot(silu.astype(wdt), w[0], preferred_element_type=jnp.float32)
        for c, b in enumerate(bases):
            acc = acc + jnp.dot(b.astype(wdt), w[c + 1],
                                preferred_element_type=jnp.float32)
        h = acc
    out_ref[...] = h


def _kan_stack_forward(params, x):
    layers = params["layers"]
    gs, so = params["grid_size"], params["spline_order"]
    coefp1 = gs + so + 1
    num_layers = len(layers)
    d0 = layers[0]["in_features"]
    dlast = layers[-1]["out_features"]

    batch = x.shape[0]
    tile_b = min(128, _round_up(batch, 8))
    batch_p = _round_up(batch, tile_b)
    if batch_p != batch:
        xp = jnp.zeros((batch_p, d0), jnp.float32).at[:batch].set(x)
    else:
        xp = x

    in_specs = [pl.BlockSpec((tile_b, d0), lambda i: (i, 0))]
    for layer in layers:
        fin, fout = layer["in_features"], layer["out_features"]
        in_specs.append(pl.BlockSpec((coefp1, fin, fout), lambda i: (0, 0, 0)))

    w_bytes = sum(coefp1 * L["in_features"] * L["out_features"] * 2
                  for L in layers)
    vmem_limit = int(min(56 << 20, max(32 << 20, 2 * w_bytes + (8 << 20))))

    kernel = functools.partial(_kan_stack_kernel, grid_size=gs, spline_order=so,
                               num_layers=num_layers)
    out = pl.pallas_call(
        kernel,
        out_shape=jax.ShapeDtypeStruct((batch_p, dlast), jnp.float32),
        grid_spec=pltpu.PrefetchScalarGridSpec(
            num_scalar_prefetch=0,
            grid=(batch_p // tile_b,),
            in_specs=in_specs,
            out_specs=pl.BlockSpec((tile_b, dlast), lambda i: (i, 0)),
        ),
        compiler_params=pltpu.CompilerParams(
            # TODO(synk): at grid=(1,) one v7x TensorCore idles; acceptable at
            # the tiny dims this path targets.
            dimension_semantics=("parallel",),
            vmem_limit_bytes=vmem_limit,
        ),
    )(xp, *[L["w_fused"] for L in layers])
    return out[:batch]


# ----------------------------------------------------------------------------
# General tiled per-layer kernel: grid (batch tiles, out tiles, in tiles)
# ----------------------------------------------------------------------------
def _kan_layer_kernel(x_ref, w_ref, out_ref, feat_ref, *,
                      grid_size, spline_order, sub_b):
    # x_ref:    (TB, TI)                 f32   input block for (bi, ki)
    # w_ref:    ((COEF+1)*TI, TO)        bf16  packed [base | c0..c7] rows
    # out_ref:  (TB, TO)                 f32   VMEM-resident across ki (accum)
    # feat_ref: (nk, TB, (COEF+1)*TI)    bf16  persistent featurization cache
    oj = pl.program_id(1)
    ki = pl.program_id(2)
    tile_b, tile_in = x_ref.shape
    fdt = feat_ref.dtype
    fk = feat_ref.at[ki]

    # (1) Featurize this (bi, ki) x-block ONCE and cache it; every output tile
    #     (oj > 0) and the matmul below reuse it.  Work in (<=sub_b, 128)
    #     chunks so live values fit the vreg file (no spills).
    @pl.when(oj == 0)
    def _featurize():
        for r0 in range(0, tile_b, sub_b):
            rows = min(sub_b, tile_b - r0)
            for c0 in range(0, tile_in, 128):
                xc = x_ref[pl.ds(r0, rows), pl.ds(c0, 128)]
                fk[pl.ds(r0, rows), pl.ds(c0, 128)] = _silu(xc).astype(fdt)
                bases = _bspline_bases(xc, grid_size, spline_order)
                for c, b in enumerate(bases):
                    col = (c + 1) * tile_in + c0
                    fk[pl.ds(r0, rows), pl.ds(col, 128)] = b.astype(fdt)

    # (2) Accumulate directly into the f32 output block (no acc scratch).
    @pl.when(ki == 0)
    def _init():
        out_ref[...] = jnp.zeros_like(out_ref)

    out_ref[...] += jnp.dot(fk[...], w_ref[...],
                            preferred_element_type=jnp.float32)


def kan_linear(x, layer, *, grid_size=GRID_SIZE, spline_order=SPLINE_ORDER,
               tile_b=TILE_B):
    """One KANLinear layer, x: (B, IN) f32 -> (B, OUT) f32 (tiled path)."""
    w_comb = layer["w_comb"]
    fin, fout = layer["in_features"], layer["out_features"]
    tile_in, tile_out = layer["tile_in"], layer["tile_out"]
    in_p, out_p = layer["in_p"], layer["out_p"]
    coefp1 = grid_size + spline_order + 1
    nk = in_p // tile_in
    k_rows = coefp1 * tile_in

    batch = x.shape[0]
    tile_b = min(tile_b, _round_up(batch, 8))
    # Keep the per-batch-tile feature cache bounded (v7x has only 64 MiB VMEM).
    while tile_b > 8 and tile_b * coefp1 * in_p * 2 > FEAT_CACHE_BUDGET:
        tile_b = max(8, _round_up(tile_b // 2, 8))
    batch_p = _round_up(batch, tile_b)
    sub_b = min(64, tile_b)

    if (batch_p, in_p) != (batch, fin):
        xp = jnp.zeros((batch_p, in_p), jnp.float32)
        xp = xp.at[:batch, :fin].set(x.astype(jnp.float32))
    else:
        xp = x.astype(jnp.float32)

    grid = (batch_p // tile_b, out_p // tile_out, nk)

    feat_bytes = nk * tile_b * k_rows * 2
    work_bytes = feat_bytes + 2 * (k_rows * tile_out * 2
                                   + tile_b * tile_in * 4
                                   + tile_b * tile_out * 4)
    vmem_limit = int(min(56 << 20, max(32 << 20, work_bytes + (8 << 20))))

    kernel = functools.partial(_kan_layer_kernel, grid_size=grid_size,
                               spline_order=spline_order, sub_b=sub_b)
    out = pl.pallas_call(
        kernel,
        out_shape=jax.ShapeDtypeStruct((batch_p, out_p), jnp.float32),
        grid_spec=pltpu.PrefetchScalarGridSpec(
            num_scalar_prefetch=0,
            grid=grid,
            in_specs=[
                pl.BlockSpec((tile_b, tile_in), lambda bi, oj, ki: (bi, ki)),
                pl.BlockSpec((k_rows, tile_out), lambda bi, oj, ki: (ki, oj)),
            ],
            out_specs=pl.BlockSpec((tile_b, tile_out),
                                   lambda bi, oj, ki: (bi, oj)),
            scratch_shapes=[pltpu.VMEM((nk, tile_b, k_rows), w_comb.dtype)],
        ),
        compiler_params=pltpu.CompilerParams(
            # oj/ki must iterate sequentially from 0 within a core so the
            # pl.when(oj == 0) feature cache is valid -> only bi is "parallel".
            dimension_semantics=("parallel", "arbitrary", "arbitrary"),
            vmem_limit_bytes=vmem_limit,
        ),
    )(xp, w_comb)
    return out[:batch, :fout]


# ----------------------------------------------------------------------------
# Parameter init + packing (deterministic, synthetic weights)
# ----------------------------------------------------------------------------
def _pack_tiled_layer(base_w, scaled_spline_w, grid_size, spline_order,
                      weight_dtype=jnp.bfloat16):
    fout, fin = base_w.shape
    coef = grid_size + spline_order
    prescale = _bspline_prescale(grid_size, spline_order)

    ti = min(TILE_IN, _round_up(fin, 128))
    to = min(TILE_OUT, _round_up(fout, 128))
    in_p = _round_up(fin, ti)
    out_p = _round_up(fout, to)
    nk = in_p // ti

    # Zero-padding is mathematically inert (padded weight columns are zero).
    bw = jnp.zeros((out_p, in_p), jnp.float32).at[:fout, :fin].set(base_w)
    sw = jnp.zeros((out_p, in_p, coef), jnp.float32)
    sw = sw.at[:fout, :fin, :].set(scaled_spline_w * prescale)

    # Rows per IN-tile: [ base | spline_c0 | ... | spline_c{COEF-1} ]
    bw_t = bw.T.reshape(nk, 1, ti, out_p)
    sw_t = jnp.transpose(sw, (2, 1, 0)).reshape(coef, nk, ti, out_p)
    sw_t = sw_t.transpose(1, 0, 2, 3)
    w_comb = jnp.concatenate([bw_t, sw_t], axis=1)
    w_comb = w_comb.reshape(nk * (coef + 1) * ti, out_p).astype(weight_dtype)
    return dict(w_comb=w_comb, in_p=in_p, out_p=out_p, tile_in=ti, tile_out=to)


def init_kan_model(key, input_dim, dim_feedforward, layers=2,
                   grid_size=GRID_SIZE, spline_order=SPLINE_ORDER,
                   mode=None, weight_dtype=jnp.bfloat16):
    layer_dims = [input_dim] + [dim_feedforward] * layers
    coef = grid_size + spline_order
    prescale = _bspline_prescale(grid_size, spline_order)

    raw = []
    total_w_bytes = 0
    for fin, fout in zip(layer_dims[:-1], layer_dims[1:]):
        key, k1, k2, k3 = jax.random.split(key, 4)
        base_w = jax.random.normal(k1, (fout, fin), jnp.float32) / jnp.sqrt(fin)
        spline_w = jax.random.normal(k2, (fout, fin, coef), jnp.float32) * 0.1
        spline_scaler = jax.random.normal(k3, (fout, fin),
                                          jnp.float32) / jnp.sqrt(fin)
        scaled = spline_w * spline_scaler[..., None]          # (OUT, IN, COEF)
        # Quantize once to bf16 and keep the dequantized f32 copies so kernel
        # and reference use (nearly) identical weight values.
        base_w = base_w.astype(weight_dtype).astype(jnp.float32)
        scaled = scaled.astype(weight_dtype).astype(jnp.float32)
        raw.append((base_w, scaled, fin, fout))
        total_w_bytes += (coef + 1) * fin * fout * 2

    if mode is None:
        mode = ("fused" if max(layer_dims) <= 256
                and 2 * total_w_bytes <= 12 * 1024 * 1024 else "tiled")

    layer_params = []
    for base_w, scaled, fin, fout in raw:
        entry = dict(base_w=base_w, spline_w=scaled,
                     in_features=fin, out_features=fout)
        if mode == "fused":
            w_fused = jnp.stack(
                [base_w.T] + [scaled[:, :, c].T * prescale for c in range(coef)],
                axis=0).astype(weight_dtype)                  # (COEF+1, IN, OUT)
            entry["w_fused"] = w_fused
        else:
            entry.update(_pack_tiled_layer(base_w, scaled, grid_size,
                                           spline_order,
                                           weight_dtype=weight_dtype))
        layer_params.append(entry)

    return dict(mode=mode, grid_size=grid_size, spline_order=spline_order,
                layers=layer_params)


def kan_model_forward(params, x):
    gs, so = params["grid_size"], params["spline_order"]
    orig_shape = x.shape
    h = x.reshape(-1, orig_shape[-1]).astype(jnp.float32)
    if params["mode"] == "fused":
        h = _kan_stack_forward(params, h)
    else:
        for layer in params["layers"]:
            h = kan_linear(h, layer, grid_size=gs, spline_order=so)
    return h.reshape(*orig_shape[:-1], h.shape[-1])


# ----------------------------------------------------------------------------
# Pure-JAX reference (mirrors efficient-KAN KANLinear.forward) for validation
# ----------------------------------------------------------------------------
def _ref_layer(x, base_w, spline_w, grid_size=GRID_SIZE,
               spline_order=SPLINE_ORDER):
    fin = base_w.shape[1]
    h = 2.0 / grid_size
    knots = (jnp.arange(-spline_order, grid_size + spline_order + 1,
                        dtype=jnp.float32) * h - 1.0)
    grid = jnp.broadcast_to(knots, (fin, knots.shape[0]))
    xx = x[..., None]
    bases = ((xx >= grid[:, :-1]) & (xx < grid[:, 1:])).astype(x.dtype)
    for k in range(1, spline_order + 1):
        bases = ((xx - grid[:, :-(k + 1)]) /
                 (grid[:, k:-1] - grid[:, :-(k + 1)]) * bases[:, :, :-1]
                 + (grid[:, k + 1:] - xx) /
                 (grid[:, k + 1:] - grid[:, 1:-k]) * bases[:, :, 1:])
    base_out = jax.nn.silu(x) @ base_w.T
    spline_out = jnp.einsum("bic,oic->bo", bases, spline_w)
    return base_out + spline_out


def _ref_forward(params, x):
    gs, so = params["grid_size"], params["spline_order"]
    for p in params["layers"]:
        x = _ref_layer(x, p["base_w"], p["spline_w"], gs, so)
    return x


# ----------------------------------------------------------------------------
if __name__ == "__main__":
    key = jax.random.PRNGKey(0)
    kx1, kp1, kx2, kp2 = jax.random.split(key, 4)

    # --- Test 1: the module's natural tiny shapes -> fused-stack path --------
    BATCH, INPUT_DIM, DIM_FF = 8, 16, 32
    x1 = jax.random.normal(kx1, (BATCH, INPUT_DIM), jnp.float32)
    params1 = init_kan_model(kp1, INPUT_DIM, DIM_FF, layers=2,
                             grid_size=GRID_SIZE)
    assert params1["mode"] == "fused"
    out1 = jax.block_until_ready(kan_model_forward(params1, x1))
    ref1 = _ref_forward(params1, x1)
    assert out1.shape == (BATCH, DIM_FF), out1.shape
    err1 = float(jnp.max(jnp.abs(out1 - ref1)))
    assert jnp.allclose(out1, ref1, rtol=2e-2, atol=2e-2), err1

    # --- Test 2: larger dims -> general tiled kernel (feat cache + K accum) --
    B2, IN2, FF2 = 64, 512, 512
    x2 = jax.random.normal(kx2, (B2, IN2), jnp.float32)
    params2 = init_kan_model(kp2, IN2, FF2, layers=2, grid_size=GRID_SIZE,
                             mode="tiled")
    out2 = jax.block_until_ready(kan_model_forward(params2, x2))
    ref2 = _ref_forward(params2, x2)
    assert out2.shape == (B2, FF2), out2.shape
    err2 = float(jnp.max(jnp.abs(out2 - ref2)))
    assert jnp.allclose(out2, ref2, rtol=3e-2, atol=3e-2), (err1, err2)

    print("KERNEL_OK")
</pallas_src>

<mosaic_0001>
module attributes {stable_mosaic.version = 11 : i64} {
  func.func @_kan_stack_kernel(%arg0: i32, %arg1: memref<8x16xf32, #tpu.memory_space<vmem>>, %arg2: memref<9x16x32xbf16, #tpu.memory_space<vmem>>, %arg3: memref<9x32x32xbf16, #tpu.memory_space<vmem>>, %arg4: memref<8x32xf32, #tpu.memory_space<vmem>>) attributes {dimension_semantics = [#tpu.dimension_semantics<parallel>], iteration_bounds = array<i64: 1>, scalar_prefetch = 0 : i64, scratch_operands = 0 : i64, tpu.core_type = #tpu.core_type<tc>, window_params = [{transform_indices = @transform_0, window_bounds = array<i64: 8, 16>}, {pipeline_mode = #tpu.pipeline_mode<synchronous>, transform_indices = @transform_1, window_bounds = array<i64: 9, 16, 32>}, {pipeline_mode = #tpu.pipeline_mode<synchronous>, transform_indices = @transform_2, window_bounds = array<i64: 9, 32, 32>}, {transform_indices = @transform_3, window_bounds = array<i64: 8, 32>}]} {
    %c0 = arith.constant 0 : index
    %c0_0 = arith.constant 0 : index
    %0 = vector.load %arg1[%c0, %c0_0] : memref<8x16xf32, #tpu.memory_space<vmem>>, vector<8x16xf32>
    %cst = arith.constant 0.000000e+00 : f32
    %1 = vector.broadcast %cst : f32 to vector<8x16xf32>
    %2 = arith.subf %1, %0 : vector<8x16xf32>
    %3 = math.exp %2 : vector<8x16xf32>
    %cst_1 = arith.constant 1.000000e+00 : f32
    %4 = vector.broadcast %cst_1 : f32 to vector<8x16xf32>
    %5 = arith.addf %4, %3 : vector<8x16xf32>
    %6 = tpu.reciprocal %5 {approx = true} : vector<8x16xf32> -> vector<8x16xf32>
    %7 = arith.mulf %0, %6 : vector<8x16xf32>
    %cst_2 = arith.constant -2.200000e+00 : f32
    %8 = vector.broadcast %cst_2 : f32 to vector<8x16xf32>
    %9 = arith.subf %0, %8 : vector<8x16xf32>
    %cst_3 = arith.constant 2.500000e+00 : f32
    %10 = vector.broadcast %cst_3 : f32 to vector<8x16xf32>
    %11 = arith.mulf %9, %10 : vector<8x16xf32>
    %12 = math.floor %11 : vector<8x16xf32>
    %13 = arith.subf %11, %12 : vector<8x16xf32>
    %14 = arith.mulf %13, %13 : vector<8x16xf32>
    %15 = arith.mulf %14, %13 : vector<8x16xf32>
    %cst_4 = arith.constant -3.000000e+00 : f32
    %16 = vector.broadcast %cst_4 : f32 to vector<8x16xf32>
    %17 = arith.mulf %16, %15 : vector<8x16xf32>
    %cst_5 = arith.constant 3.000000e+00 : f32
    %18 = vector.broadcast %cst_5 : f32 to vector<8x16xf32>
    %19 = arith.mulf %18, %14 : vector<8x16xf32>
    %20 = arith.addf %17, %19 : vector<8x16xf32>
    %cst_6 = arith.constant 3.000000e+00 : f32
    %21 = vector.broadcast %cst_6 : f32 to vector<8x16xf32>
    %22 = arith.mulf %21, %13 : vector<8x16xf32>
    %23 = arith.addf %20, %22 : vector<8x16xf32>
    %cst_7 = arith.constant 1.000000e+00 : f32
    %24 = vector.broadcast %cst_7 : f32 to vector<8x16xf32>
    %25 = arith.addf %23, %24 : vector<8x16xf32>
    %cst_8 = arith.constant 3.000000e+00 : f32
    %26 = vector.broadcast %cst_8 : f32 to vector<8x16xf32>
    %27 = arith.mulf %26, %15 : vector<8x16xf32>
    %cst_9 = arith.constant 6.000000e+00 : f32
    %28 = vector.broadcast %cst_9 : f32 to vector<8x16xf32>
    %29 = arith.mulf %28, %14 : vector<8x16xf32>
    %30 = arith.subf %27, %29 : vector<8x16xf32>
    %cst_10 = arith.constant 4.000000e+00 : f32
    %31 = vector.broadcast %cst_10 : f32 to vector<8x16xf32>
    %32 = arith.addf %30, %31 : vector<8x16xf32>
    %cst_11 = arith.constant 1.000000e+00 : f32
    %33 = vector.broadcast %cst_11 : f32 to vector<8x16xf32>
    %34 = arith.subf %33, %13 : vector<8x16xf32>
    %35 = arith.mulf %34, %34 : vector<8x16xf32>
    %36 = arith.mulf %35, %34 : vector<8x16xf32>
    %cst_12 = arith.constant 0.000000e+00 : f32
    %37 = vector.broadcast %cst_12 : f32 to vector<8x16xf32>
    %38 = arith.cmpf oeq, %12, %37 : vector<8x16xf32>
    %cst_13 = arith.constant 1.000000e+00 : f32
    %39 = vector.broadcast %cst_13 : f32 to vector<8x16xf32>
    %40 = arith.cmpf oeq, %12, %39 : vector<8x16xf32>
    %cst_14 = arith.constant 2.000000e+00 : f32
    %41 = vector.broadcast %cst_14 : f32 to vector<8x16xf32>
    %42 = arith.cmpf oeq, %12, %41 : vector<8x16xf32>
    %cst_15 = arith.constant 3.000000e+00 : f32
    %43 = vector.broadcast %cst_15 : f32 to vector<8x16xf32>
    %44 = arith.cmpf oeq, %12, %43 : vector<8x16xf32>
    %cst_16 = arith.constant 0.000000e+00 : f32
    %45 = vector.broadcast %cst_16 : f32 to vector<8x16xf32>
    %46 = arith.select %44, %36, %45 : vector<8x16xi1>, vector<8x16xf32>
    %47 = arith.select %42, %32, %46 : vector<8x16xi1>, vector<8x16xf32>
    %48 = arith.select %40, %25, %47 : vector<8x16xi1>, vector<8x16xf32>
    %49 = arith.select %38, %15, %48 : vector<8x16xi1>, vector<8x16xf32>
    %cst_17 = arith.constant 1.000000e+00 : f32
    %50 = vector.broadcast %cst_17 : f32 to vector<8x16xf32>
    %51 = arith.cmpf oeq, %12, %50 : vector<8x16xf32>
    %cst_18 = arith.constant 2.000000e+00 : f32
    %52 = vector.broadcast %cst_18 : f32 to vector<8x16xf32>
    %53 = arith.cmpf oeq, %12, %52 : vector<8x16xf32>
    %cst_19 = arith.constant 3.000000e+00 : f32
    %54 = vector.broadcast %cst_19 : f32 to vector<8x16xf32>
    %55 = arith.cmpf oeq, %12, %54 : vector<8x16xf32>
    %cst_20 = arith.constant 4.000000e+00 : f32
    %56 = vector.broadcast %cst_20 : f32 to vector<8x16xf32>
    %57 = arith.cmpf oeq, %12, %56 : vector<8x16xf32>
    %cst_21 = arith.constant 0.000000e+00 : f32
    %58 = vector.broadcast %cst_21 : f32 to vector<8x16xf32>
    %59 = arith.select %57, %36, %58 : vector<8x16xi1>, vector<8x16xf32>
    %60 = arith.select %55, %32, %59 : vector<8x16xi1>, vector<8x16xf32>
    %61 = arith.select %53, %25, %60 : vector<8x16xi1>, vector<8x16xf32>
    %62 = arith.select %51, %15, %61 : vector<8x16xi1>, vector<8x16xf32>
    %cst_22 = arith.constant 2.000000e+00 : f32
    %63 = vector.broadcast %cst_22 : f32 to vector<8x16xf32>
    %64 = arith.cmpf oeq, %12, %63 : vector<8x16xf32>
    %cst_23 = arith.constant 3.000000e+00 : f32
    %65 = vector.broadcast %cst_23 : f32 to vector<8x16xf32>
    %66 = arith.cmpf oeq, %12, %65 : vector<8x16xf32>
    %cst_24 = arith.constant 4.000000e+00 : f32
    %67 = vector.broadcast %cst_24 : f32 to vector<8x16xf32>
    %68 = arith.cmpf oeq, %12, %67 : vector<8x16xf32>
    %cst_25 = arith.constant 5.000000e+00 : f32
    %69 = vector.broadcast %cst_25 : f32 to vector<8x16xf32>
    %70 = arith.cmpf oeq, %12, %69 : vector<8x16xf32>
    %cst_26 = arith.constant 0.000000e+00 : f32
    %71 = vector.broadcast %cst_26 : f32 to vector<8x16xf32>
    %72 = arith.select %70, %36, %71 : vector<8x16xi1>, vector<8x16xf32>
    %73 = arith.select %68, %32, %72 : vector<8x16xi1>, vector<8x16xf32>
    %74 = arith.select %66, %25, %73 : vector<8x16xi1>, vector<8x16xf32>
    %75 = arith.select %64, %15, %74 : vector<8x16xi1>, vector<8x16xf32>
    %cst_27 = arith.constant 3.000000e+00 : f32
    %76 = vector.broadcast %cst_27 : f32 to vector<8x16xf32>
    %77 = arith.cmpf oeq, %12, %76 : vector<8x16xf32>
    %cst_28 = arith.constant 4.000000e+00 : f32
    %78 = vector.broadcast %cst_28 : f32 to vector<8x16xf32>
    %79 = arith.cmpf oeq, %12, %78 : vector<8x16xf32>
    %cst_29 = arith.constant 5.000000e+00 : f32
    %80 = vector.broadcast %cst_29 : f32 to vector<8x16xf32>
    %81 = arith.cmpf oeq, %12, %80 : vector<8x16xf32>
    %cst_30 = arith.constant 6.000000e+00 : f32
    %82 = vector.broadcast %cst_30 : f32 to vector<8x16xf32>
    %83 = arith.cmpf oeq, %12, %82 : vector<8x16xf32>
    %cst_31 = arith.constant 0.000000e+00 : f32
    %84 = vector.broadcast %cst_31 : f32 to vector<8x16xf32>
    %85 = arith.select %83, %36, %84 : vector<8x16xi1>, vector<8x16xf32>
    %86 = arith.select %81, %32, %85 : vector<8x16xi1>, vector<8x16xf32>
    %87 = arith.select %79, %25, %86 : vector<8x16xi1>, vector<8x16xf32>
    %88 = arith.select %77, %15, %87 : vector<8x16xi1>, vector<8x16xf32>
    %cst_32 = arith.constant 4.000000e+00 : f32
    %89 = vector.broadcast %cst_32 : f32 to vector<8x16xf32>
    %90 = arith.cmpf oeq, %12, %89 : vector<8x16xf32>
    %cst_33 = arith.constant 5.000000e+00 : f32
    %91 = vector.broadcast %cst_33 : f32 to vector<8x16xf32>
    %92 = arith.cmpf oeq, %12, %91 : vector<8x16xf32>
    %cst_34 = arith.constant 6.000000e+00 : f32
    %93 = vector.broadcast %cst_34 : f32 to vector<8x16xf32>
    %94 = arith.cmpf oeq, %12, %93 : vector<8x16xf32>
    %cst_35 = arith.constant 7.000000e+00 : f32
    %95 = vector.broadcast %cst_35 : f32 to vector<8x16xf32>
    %96 = arith.cmpf oeq, %12, %95 : vector<8x16xf32>
    %cst_36 = arith.constant 0.000000e+00 : f32
    %97 = vector.broadcast %cst_36 : f32 to vector<8x16xf32>
    %98 = arith.select %96, %36, %97 : vector<8x16xi1>, vector<8x16xf32>
    %99 = arith.select %94, %32, %98 : vector<8x16xi1>, vector<8x16xf32>
    %100 = arith.select %92, %25, %99 : vector<8x16xi1>, vector<8x16xf32>
    %101 = arith.select %90, %15, %100 : vector<8x16xi1>, vector<8x16xf32>
    %cst_37 = arith.constant 5.000000e+00 : f32
    %102 = vector.broadcast %cst_37 : f32 to vector<8x16xf32>
    %103 = arith.cmpf oeq, %12, %102 : vector<8x16xf32>
    %cst_38 = arith.constant 6.000000e+00 : f32
    %104 = vector.broadcast %cst_38 : f32 to vector<8x16xf32>
    %105 = arith.cmpf oeq, %12, %104 : vector<8x16xf32>
    %cst_39 = arith.constant 7.000000e+00 : f32
    %106 = vector.broadcast %cst_39 : f32 to vector<8x16xf32>
    %107 = arith.cmpf oeq, %12, %106 : vector<8x16xf32>
    %cst_40 = arith.constant 8.000000e+00 : f32
    %108 = vector.broadcast %cst_40 : f32 to vector<8x16xf32>
    %109 = arith.cmpf oeq, %12, %108 : vector<8x16xf32>
    %cst_41 = arith.constant 0.000000e+00 : f32
    %110 = vector.broadcast %cst_41 : f32 to vector<8x16xf32>
    %111 = arith.select %109, %36, %110 : vector<8x16xi1>, vector<8x16xf32>
    %112 = arith.select %107, %32, %111 : vector<8x16xi1>, vector<8x16xf32>
    %113 = arith.select %105, %25, %112 : vector<8x16xi1>, vector<8x16xf32>
    %114 = arith.select %103, %15, %113 : vector<8x16xi1>, vector<8x16xf32>
    %cst_42 = arith.constant 6.000000e+00 : f32
    %115 = vector.broadcast %cst_42 : f32 to vector<8x16xf32>
    %116 = arith.cmpf oeq, %12, %115 : vector<8x16xf32>
    %cst_43 = arith.constant 7.000000e+00 : f32
    %117 = vector.broadcast %cst_43 : f32 to vector<8x16xf32>
    %118 = arith.cmpf oeq, %12, %117 : vector<8x16xf32>
    %cst_44 = arith.constant 8.000000e+00 : f32
    %119 = vector.broadcast %cst_44 : f32 to vector<8x16xf32>
    %120 = arith.cmpf oeq, %12, %119 : vector<8x16xf32>
    %cst_45 = arith.constant 9.000000e+00 : f32
    %121 = vector.broadcast %cst_45 : f32 to vector<8x16xf32>
    %122 = arith.cmpf oeq, %12, %121 : vector<8x16xf32>
    %cst_46 = arith.constant 0.000000e+00 : f32
    %123 = vector.broadcast %cst_46 : f32 to vector<8x16xf32>
    %124 = arith.select %122, %36, %123 : vector<8x16xi1>, vector<8x16xf32>
    %125 = arith.select %120, %32, %124 : vector<8x16xi1>, vector<8x16xf32>
    %126 = arith.select %118, %25, %125 : vector<8x16xi1>, vector<8x16xf32>
    %127 = arith.select %116, %15, %126 : vector<8x16xi1>, vector<8x16xf32>
    %cst_47 = arith.constant 7.000000e+00 : f32
    %128 = vector.broadcast %cst_47 : f32 to vector<8x16xf32>
    %129 = arith.cmpf oeq, %12, %128 : vector<8x16xf32>
    %cst_48 = arith.constant 8.000000e+00 : f32
    %130 = vector.broadcast %cst_48 : f32 to vector<8x16xf32>
    %131 = arith.cmpf oeq, %12, %130 : vector<8x16xf32>
    %cst_49 = arith.constant 9.000000e+00 : f32
    %132 = vector.broadcast %cst_49 : f32 to vector<8x16xf32>
    %133 = arith.cmpf oeq, %12, %132 : vector<8x16xf32>
    %cst_50 = arith.constant 1.000000e+01 : f32
    %134 = vector.broadcast %cst_50 : f32 to vector<8x16xf32>
    %135 = arith.cmpf oeq, %12, %134 : vector<8x16xf32>
    %cst_51 = arith.constant 0.000000e+00 : f32
    %136 = vector.broadcast %cst_51 : f32 to vector<8x16xf32>
    %137 = arith.select %135, %36, %136 : vector<8x16xi1>, vector<8x16xf32>
    %138 = arith.select %133, %32, %137 : vector<8x16xi1>, vector<8x16xf32>
    %139 = arith.select %131, %25, %138 : vector<8x16xi1>, vector<8x16xf32>
    %140 = arith.select %129, %15, %139 : vector<8x16xi1>, vector<8x16xf32>
    %141 = arith.truncf %7 : vector<8x16xf32> to vector<8x16xbf16>
    %c0_52 = arith.constant 0 : index
    %c0_53 = arith.constant 0 : index
    %c0_54 = arith.constant 0 : index
    %142 = vector.load %arg2[%c0_52, %c0_53, %c0_54] : memref<9x16x32xbf16, #tpu.memory_space<vmem>>, vector<1x16x32xbf16>
    %143 = vector.shape_cast %142 : vector<1x16x32xbf16> to vector<16x32xbf16>
    %cst_55 = arith.constant dense<0.000000e+00> : vector<8x32xf32>
    %144 = tpu.matmul %141, %143, %cst_55 {dimension_numbers = #tpu.dot_dimension_numbers<[1], [0], [0], [1], [0, 0, 1, 1], [], []>} : vector<8x16xbf16>, vector<16x32xbf16>, vector<8x32xf32> -> vector<8x32xf32>
    %145 = arith.truncf %49 : vector<8x16xf32> to vector<8x16xbf16>
    %c1 = arith.constant 1 : index
    %c0_56 = arith.constant 0 : index
    %c0_57 = arith.constant 0 : index
    %146 = vector.load %arg2[%c1, %c0_56, %c0_57] : memref<9x16x32xbf16, #tpu.memory_space<vmem>>, vector<1x16x32xbf16>
    %147 = vector.shape_cast %146 : vector<1x16x32xbf16> to vector<16x32xbf16>
    %cst_58 = arith.constant dense<0.000000e+00> : vector<8x32xf32>
    %148 = tpu.matmul %145, %147, %cst_58 {dimension_numbers = #tpu.dot_dimension_numbers<[1], [0], [0], [1], [0, 0, 1, 1], [], []>} : vector<8x16xbf16>, vector<16x32xbf16>, vector<8x32xf32> -> vector<8x32xf32>
    %149 = arith.addf %144, %148 : vector<8x32xf32>
    %150 = arith.truncf %62 : vector<8x16xf32> to vector<8x16xbf16>
    %c2 = arith.constant 2 : index
    %c0_59 = arith.constant 0 : index
    %c0_60 = arith.constant 0 : index
    %151 = vector.load %arg2[%c2, %c0_59, %c0_60] : memref<9x16x32xbf16, #tpu.memory_space<vmem>>, vector<1x16x32xbf16>
    %152 = vector.shape_cast %151 : vector<1x16x32xbf16> to vector<16x32xbf16>
    %cst_61 = arith.constant dense<0.000000e+00> : vector<8x32xf32>
    %153 = tpu.matmul %150, %152, %cst_61 {dimension_numbers = #tpu.dot_dimension_numbers<[1], [0], [0], [1], [0, 0, 1, 1], [], []>} : vector<8x16xbf16>, vector<16x32xbf16>, vector<8x32xf32> -> vector<8x32xf32>
    %154 = arith.addf %149, %153 : vector<8x32xf32>
    %155 = arith.truncf %75 : vector<8x16xf32> to vector<8x16xbf16>
    %c3 = arith.constant 3 : index
    %c0_62 = arith.constant 0 : index
    %c0_63 = arith.constant 0 : index
    %156 = vector.load %arg2[%c3, %c0_62, %c0_63] : memref<9x16x32xbf16, #tpu.memory_space<vmem>>, vector<1x16x32xbf16>
    %157 = vector.shape_cast %156 : vector<1x16x32xbf16> to vector<16x32xbf16>
    %cst_64 = arith.constant dense<0.000000e+00> : vector<8x32xf32>
    %158 = tpu.matmul %155, %157, %cst_64 {dimension_numbers = #tpu.dot_dimension_numbers<[1], [0], [0], [1], [0, 0, 1, 1], [], []>} : vector<8x16xbf16>, vector<16x32xbf16>, vector<8x32xf32> -> vector<8x32xf32>
    %159 = arith.addf %154, %158 : vector<8x32xf32>
    %160 = arith.truncf %88 : vector<8x16xf32> to vector<8x16xbf16>
    %c4 = arith.constant 4 : index
    %c0_65 = arith.constant 0 : index
    %c0_66 = arith.constant 0 : index
    %161 = vector.load %arg2[%c4, %c0_65, %c0_66] : memref<9x16x32xbf16, #tpu.memory_space<vmem>>, vector<1x16x32xbf16>
    %162 = vector.shape_cast %161 : vector<1x16x32xbf16> to vector<16x32xbf16>
    %cst_67 = arith.constant dense<0.000000e+00> : vector<8x32xf32>
    %163 = tpu.matmul %160, %162, %cst_67 {dimension_numbers = #tpu.dot_dimension_numbers<[1], [0], [0], [1], [0, 0, 1, 1], [], []>} : vector<8x16xbf16>, vector<16x32xbf16>, vector<8x32xf32> -> vector<8x32xf32>
    %164 = arith.addf %159, %163 : vector<8x32xf32>
    %165 = arith.truncf %101 : vector<8x16xf32> to vector<8x16xbf16>
    %c5 = arith.constant 5 : index
    %c0_68 = arith.constant 0 : index
    %c0_69 = arith.constant 0 : index
    %166 = vector.load %arg2[%c5, %c0_68, %c0_69] : memref<9x16x32xbf16, #tpu.memory_space<vmem>>, vector<1x16x32xbf16>
    %167 = vector.shape_cast %166 : vector<1x16x32xbf16> to vector<16x32xbf16>
    %cst_70 = arith.constant dense<0.000000e+00> : vector<8x32xf32>
    %168 = tpu.matmul %165, %167, %cst_70 {dimension_numbers = #tpu.dot_dimension_numbers<[1], [0], [0], [1], [0, 0, 1, 1], [], []>} : vector<8x16xbf16>, vector<16x32xbf16>, vector<8x32xf32> -> vector<8x32xf32>
    %169 = arith.addf %164, %168 : vector<8x32xf32>
    %170 = arith.truncf %114 : vector<8x16xf32> to vector<8x16xbf16>
    %c6 = arith.constant 6 : index
    %c0_71 = arith.constant 0 : index
    %c0_72 = arith.constant 0 : index
    %171 = vector.load %arg2[%c6, %c0_71, %c0_72] : memref<9x16x32xbf16, #tpu.memory_space<vmem>>, vector<1x16x32xbf16>
    %172 = vector.shape_cast %171 : vector<1x16x32xbf16> to vector<16x32xbf16>
    %cst_73 = arith.constant dense<0.000000e+00> : vector<8x32xf32>
    %173 = tpu.matmul %170, %172, %cst_73 {dimension_numbers = #tpu.dot_dimension_numbers<[1], [0], [0], [1], [0, 0, 1, 1], [], []>} : vector<8x16xbf16>, vector<16x32xbf16>, vector<8x32xf32> -> vector<8x32xf32>
    %174 = arith.addf %169, %173 : vector<8x32xf32>
    %175 = arith.truncf %127 : vector<8x16xf32> to vector<8x16xbf16>
    %c7 = arith.constant 7 : index
    %c0_74 = arith.constant 0 : index
    %c0_75 = arith.constant 0 : index
    %176 = vector.load %arg2[%c7, %c0_74, %c0_75] : memref<9x16x32xbf16, #tpu.memory_space<vmem>>, vector<1x16x32xbf16>
    %177 = vector.shape_cast %176 : vector<1x16x32xbf16> to vector<16x32xbf16>
    %cst_76 = arith.constant dense<0.000000e+00> : vector<8x32xf32>
    %178 = tpu.matmul %175, %177, %cst_76 {dimension_numbers = #tpu.dot_dimension_numbers<[1], [0], [0], [1], [0, 0, 1, 1], [], []>} : vector<8x16xbf16>, vector<16x32xbf16>, vector<8x32xf32> -> vector<8x32xf32>
    %179 = arith.addf %174, %178 : vector<8x32xf32>
    %180 = arith.truncf %140 : vector<8x16xf32> to vector<8x16xbf16>
    %c8 = arith.constant 8 : index
    %c0_77 = arith.constant 0 : index
    %c0_78 = arith.constant 0 : index
    %181 = vector.load %arg2[%c8, %c0_77, %c0_78] : memref<9x16x32xbf16, #tpu.memory_space<vmem>>, vector<1x16x32xbf16>
    %182 = vector.shape_cast %181 : vector<1x16x32xbf16> to vector<16x32xbf16>
    %cst_79 = arith.constant dense<0.000000e+00> : vector<8x32xf32>
    %183 = tpu.matmul %180, %182, %cst_79 {dimension_numbers = #tpu.dot_dimension_numbers<[1], [0], [0], [1], [0, 0, 1, 1], [], []>} : vector<8x16xbf16>, vector<16x32xbf16>, vector<8x32xf32> -> vector<8x32xf32>
    %184 = arith.addf %179, %183 : vector<8x32xf32>
    %cst_80 = arith.constant 0.000000e+00 : f32
    %185 = vector.broadcast %cst_80 : f32 to vector<8x32xf32>
    %186 = arith.subf %185, %184 : vector<8x32xf32>
    %187 = math.exp %186 : vector<8x32xf32>
    %cst_81 = arith.constant 1.000000e+00 : f32
    %188 = vector.broadcast %cst_81 : f32 to vector<8x32xf32>
    %189 = arith.addf %188, %187 : vector<8x32xf32>
    %190 = tpu.reciprocal %189 {approx = true} : vector<8x32xf32> -> vector<8x32xf32>
    %191 = arith.mulf %184, %190 : vector<8x32xf32>
    %cst_82 = arith.constant -2.200000e+00 : f32
    %192 = vector.broadcast %cst_82 : f32 to vector<8x32xf32>
    %193 = arith.subf %184, %192 : vector<8x32xf32>
    %cst_83 = arith.constant 2.500000e+00 : f32
    %194 = vector.broadcast %cst_83 : f32 to vector<8x32xf32>
    %195 = arith.mulf %193, %194 : vector<8x32xf32>
    %196 = math.floor %195 : vector<8x32xf32>
    %197 = arith.subf %195, %196 : vector<8x32xf32>
    %198 = arith.mulf %197, %197 : vector<8x32xf32>
    %199 = arith.mulf %198, %197 : vector<8x32xf32>
    %cst_84 = arith.constant -3.000000e+00 : f32
    %200 = vector.broadcast %cst_84 : f32 to vector<8x32xf32>
    %201 = arith.mulf %200, %199 : vector<8x32xf32>
    %cst_85 = arith.constant 3.000000e+00 : f32
    %202 = vector.broadcast %cst_85 : f32 to vector<8x32xf32>
    %203 = arith.mulf %202, %198 : vector<8x32xf32>
    %204 = arith.addf %201, %203 : vector<8x32xf32>
    %cst_86 = arith.constant 3.000000e+00 : f32
    %205 = vector.broadcast %cst_86 : f32 to vector<8x32xf32>
    %206 = arith.mulf %205, %197 : vector<8x32xf32>
    %207 = arith.addf %204, %206 : vector<8x32xf32>
    %cst_87 = arith.constant 1.000000e+00 : f32
    %208 = vector.broadcast %cst_87 : f32 to vector<8x32xf32>
    %209 = arith.addf %207, %208 : vector<8x32xf32>
    %cst_88 = arith.constant 3.000000e+00 : f32
    %210 = vector.broadcast %cst_88 : f32 to vector<8x32xf32>
    %211 = arith.mulf %210, %199 : vector<8x32xf32>
    %cst_89 = arith.constant 6.000000e+00 : f32
    %212 = vector.broadcast %cst_89 : f32 to vector<8x32xf32>
    %213 = arith.mulf %212, %198 : vector<8x32xf32>
    %214 = arith.subf %211, %213 : vector<8x32xf32>
    %cst_90 = arith.constant 4.000000e+00 : f32
    %215 = vector.broadcast %cst_90 : f32 to vector<8x32xf32>
    %216 = arith.addf %214, %215 : vector<8x32xf32>
    %cst_91 = arith.constant 1.000000e+00 : f32
    %217 = vector.broadcast %cst_91 : f32 to vector<8x32xf32>
    %218 = arith.subf %217, %197 : vector<8x32xf32>
    %219 = arith.mulf %218, %218 : vector<8x32xf32>
    %220 = arith.mulf %219, %218 : vector<8x32xf32>
    %cst_92 = arith.constant 0.000000e+00 : f32
    %221 = vector.broadcast %cst_92 : f32 to vector<8x32xf32>
    %222 = arith.cmpf oeq, %196, %221 : vector<8x32xf32>
    %cst_93 = arith.constant 1.000000e+00 : f32
    %223 = vector.broadcast %cst_93 : f32 to vector<8x32xf32>
    %224 = arith.cmpf oeq, %196, %223 : vector<8x32xf32>
    %cst_94 = arith.constant 2.000000e+00 : f32
    %225 = vector.broadcast %cst_94 : f32 to vector<8x32xf32>
    %226 = arith.cmpf oeq, %196, %225 : vector<8x32xf32>
    %cst_95 = arith.constant 3.000000e+00 : f32
    %227 = vector.broadcast %cst_95 : f32 to vector<8x32xf32>
    %228 = arith.cmpf oeq, %196, %227 : vector<8x32xf32>
    %cst_96 = arith.constant 0.000000e+00 : f32
    %229 = vector.broadcast %cst_96 : f32 to vector<8x32xf32>
    %230 = arith.select %228, %220, %229 : vector<8x32xi1>, vector<8x32xf32>
    %231 = arith.select %226, %216, %230 : vector<8x32xi1>, vector<8x32xf32>
    %232 = arith.select %224, %209, %231 : vector<8x32xi1>, vector<8x32xf32>
    %233 = arith.select %222, %199, %232 : vector<8x32xi1>, vector<8x32xf32>
    %cst_97 = arith.constant 1.000000e+00 : f32
    %234 = vector.broadcast %cst_97 : f32 to vector<8x32xf32>
    %235 = arith.cmpf oeq, %196, %234 : vector<8x32xf32>
    %cst_98 = arith.constant 2.000000e+00 : f32
    %236 = vector.broadcast %cst_98 : f32 to vector<8x32xf32>
    %237 = arith.cmpf oeq, %196, %236 : vector<8x32xf32>
    %cst_99 = arith.constant 3.000000e+00 : f32
    %238 = vector.broadcast %cst_99 : f32 to vector<8x32xf32>
    %239 = arith.cmpf oeq, %196, %238 : vector<8x32xf32>
    %cst_100 = arith.constant 4.000000e+00 : f32
    %240 = vector.broadcast %cst_100 : f32 to vector<8x32xf32>
    %241 = arith.cmpf oeq, %196, %240 : vector<8x32xf32>
    %cst_101 = arith.constant 0.000000e+00 : f32
    %242 = vector.broadcast %cst_101 : f32 to vector<8x32xf32>
    %243 = arith.select %241, %220, %242 : vector<8x32xi1>, vector<8x32xf32>
    %244 = arith.select %239, %216, %243 : vector<8x32xi1>, vector<8x32xf32>
    %245 = arith.select %237, %209, %244 : vector<8x32xi1>, vector<8x32xf32>
    %246 = arith.select %235, %199, %245 : vector<8x32xi1>, vector<8x32xf32>
    %cst_102 = arith.constant 2.000000e+00 : f32
    %247 = vector.broadcast %cst_102 : f32 to vector<8x32xf32>
    %248 = arith.cmpf oeq, %196, %247 : vector<8x32xf32>
    %cst_103 = arith.constant 3.000000e+00 : f32
    %249 = vector.broadcast %cst_103 : f32 to vector<8x32xf32>
    %250 = arith.cmpf oeq, %196, %249 : vector<8x32xf32>
    %cst_104 = arith.constant 4.000000e+00 : f32
    %251 = vector.broadcast %cst_104 : f32 to vector<8x32xf32>
    %252 = arith.cmpf oeq, %196, %251 : vector<8x32xf32>
    %cst_105 = arith.constant 5.000000e+00 : f32
    %253 = vector.broadcast %cst_105 : f32 to vector<8x32xf32>
    %254 = arith.cmpf oeq, %196, %253 : vector<8x32xf32>
    %cst_106 = arith.constant 0.000000e+00 : f32
    %255 = vector.broadcast %cst_106 : f32 to vector<8x32xf32>
    %256 = arith.select %254, %220, %255 : vector<8x32xi1>, vector<8x32xf32>
    %257 = arith.select %252, %216, %256 : vector<8x32xi1>, vector<8x32xf32>
    %258 = arith.select %250, %209, %257 : vector<8x32xi1>, vector<8x32xf32>
    %259 = arith.select %248, %199, %258 : vector<8x32xi1>, vector<8x32xf32>
    %cst_107 = arith.constant 3.000000e+00 : f32
    %260 = vector.broadcast %cst_107 : f32 to vector<8x32xf32>
    %261 = arith.cmpf oeq, %196, %260 : vector<8x32xf32>
    %cst_108 = arith.constant 4.000000e+00 : f32
    %262 = vector.broadcast %cst_108 : f32 to vector<8x32xf32>
    %263 = arith.cmpf oeq, %196, %262 : vector<8x32xf32>
    %cst_109 = arith.constant 5.000000e+00 : f32
    %264 = vector.broadcast %cst_109 : f32 to vector<8x32xf32>
    %265 = arith.cmpf oeq, %196, %264 : vector<8x32xf32>
    %cst_110 = arith.constant 6.000000e+00 : f32
    %266 = vector.broadcast %cst_110 : f32 to vector<8x32xf32>
    %267 = arith.cmpf oeq, %196, %266 : vector<8x32xf32>
    %cst_111 = arith.constant 0.000000e+00 : f32
    %268 = vector.broadcast %cst_111 : f32 to vector<8x32xf32>
    %269 = arith.select %267, %220, %268 : vector<8x32xi1>, vector<8x32xf32>
    %270 = arith.select %265, %216, %269 : vector<8x32xi1>, vector<8x32xf32>
    %271 = arith.select %263, %209, %270 : vector<8x32xi1>, vector<8x32xf32>
    %272 = arith.select %261, %199, %271 : vector<8x32xi1>, vector<8x32xf32>
    %cst_112 = arith.constant 4.000000e+00 : f32
    %273 = vector.broadcast %cst_112 : f32 to vector<8x32xf32>
    %274 = arith.cmpf oeq, %196, %273 : vector<8x32xf32>
    %cst_113 = arith.constant 5.000000e+00 : f32
    %275 = vector.broadcast %cst_113 : f32 to vector<8x32xf32>
    %276 = arith.cmpf oeq, %196, %275 : vector<8x32xf32>
    %cst_114 = arith.constant 6.000000e+00 : f32
    %277 = vector.broadcast %cst_114 : f32 to vector<8x32xf32>
    %278 = arith.cmpf oeq, %196, %277 : vector<8x32xf32>
    %cst_115 = arith.constant 7.000000e+00 : f32
    %279 = vector.broadcast %cst_115 : f32 to vector<8x32xf32>
    %280 = arith.cmpf oeq, %196, %279 : vector<8x32xf32>
    %cst_116 = arith.constant 0.000000e+00 : f32
    %281 = vector.broadcast %cst_116 : f32 to vector<8x32xf32>
    %282 = arith.select %280, %220, %281 : vector<8x32xi1>, vector<8x32xf32>
    %283 = arith.select %278, %216, %282 : vector<8x32xi1>, vector<8x32xf32>
    %284 = arith.select %276, %209, %283 : vector<8x32xi1>, vector<8x32xf32>
    %285 = arith.select %274, %199, %284 : vector<8x32xi1>, vector<8x32xf32>
    %cst_117 = arith.constant 5.000000e+00 : f32
    %286 = vector.broadcast %cst_117 : f32 to vector<8x32xf32>
    %287 = arith.cmpf oeq, %196, %286 : vector<8x32xf32>
    %cst_118 = arith.constant 6.000000e+00 : f32
    %288 = vector.broadcast %cst_118 : f32 to vector<8x32xf32>
    %289 = arith.cmpf oeq, %196, %288 : vector<8x32xf32>
    %cst_119 = arith.constant 7.000000e+00 : f32
    %290 = vector.broadcast %cst_119 : f32 to vector<8x32xf32>
    %291 = arith.cmpf oeq, %196, %290 : vector<8x32xf32>
    %cst_120 = arith.constant 8.000000e+00 : f32
    %292 = vector.broadcast %cst_120 : f32 to vector<8x32xf32>
    %293 = arith.cmpf oeq, %196, %292 : vector<8x32xf32>
    %cst_121 = arith.constant 0.000000e+00 : f32
    %294 = vector.broadcast %cst_121 : f32 to vector<8x32xf32>
    %295 = arith.select %293, %220, %294 : vector<8x32xi1>, vector<8x32xf32>
    %296 = arith.select %291, %216, %295 : vector<8x32xi1>, vector<8x32xf32>
    %297 = arith.select %289, %209, %296 : vector<8x32xi1>, vector<8x32xf32>
    %298 = arith.select %287, %199, %297 : vector<8x32xi1>, vector<8x32xf32>
    %cst_122 = arith.constant 6.000000e+00 : f32
    %299 = vector.broadcast %cst_122 : f32 to vector<8x32xf32>
    %300 = arith.cmpf oeq, %196, %299 : vector<8x32xf32>
    %cst_123 = arith.constant 7.000000e+00 : f32
    %301 = vector.broadcast %cst_123 : f32 to vector<8x32xf32>
    %302 = arith.cmpf oeq, %196, %301 : vector<8x32xf32>
    %cst_124 = arith.constant 8.000000e+00 : f32
    %303 = vector.broadcast %cst_124 : f32 to vector<8x32xf32>
    %304 = arith.cmpf oeq, %196, %303 : vector<8x32xf32>
    %cst_125 = arith.constant 9.000000e+00 : f32
    %305 = vector.broadcast %cst_125 : f32 to vector<8x32xf32>
    %306 = arith.cmpf oeq, %196, %305 : vector<8x32xf32>
    %cst_126 = arith.constant 0.000000e+00 : f32
    %307 = vector.broadcast %cst_126 : f32 to vector<8x32xf32>
    %308 = arith.select %306, %220, %307 : vector<8x32xi1>, vector<8x32xf32>
    %309 = arith.select %304, %216, %308 : vector<8x32xi1>, vector<8x32xf32>
    %310 = arith.select %302, %209, %309 : vector<8x32xi1>, vector<8x32xf32>
    %311 = arith.select %300, %199, %310 : vector<8x32xi1>, vector<8x32xf32>
    %cst_127 = arith.constant 7.000000e+00 : f32
    %312 = vector.broadcast %cst_127 : f32 to vector<8x32xf32>
    %313 = arith.cmpf oeq, %196, %312 : vector<8x32xf32>
    %cst_128 = arith.constant 8.000000e+00 : f32
    %314 = vector.broadcast %cst_128 : f32 to vector<8x32xf32>
    %315 = arith.cmpf oeq, %196, %314 : vector<8x32xf32>
    %cst_129 = arith.constant 9.000000e+00 : f32
    %316 = vector.broadcast %cst_129 : f32 to vector<8x32xf32>
    %317 = arith.cmpf oeq, %196, %316 : vector<8x32xf32>
    %cst_130 = arith.constant 1.000000e+01 : f32
    %318 = vector.broadcast %cst_130 : f32 to vector<8x32xf32>
    %319 = arith.cmpf oeq, %196, %318 : vector<8x32xf32>
    %cst_131 = arith.constant 0.000000e+00 : f32
    %320 = vector.broadcast %cst_131 : f32 to vector<8x32xf32>
    %321 = arith.select %319, %220, %320 : vector<8x32xi1>, vector<8x32xf32>
    %322 = arith.select %317, %216, %321 : vector<8x32xi1>, vector<8x32xf32>
    %323 = arith.select %315, %209, %322 : vector<8x32xi1>, vector<8x32xf32>
    %324 = arith.select %313, %199, %323 : vector<8x32xi1>, vector<8x32xf32>
    %325 = arith.truncf %191 : vector<8x32xf32> to vector<8x32xbf16>
    %c0_132 = arith.constant 0 : index
    %c0_133 = arith.constant 0 : index
    %c0_134 = arith.constant 0 : index
    %326 = vector.load %arg3[%c0_132, %c0_133, %c0_134] : memref<9x32x32xbf16, #tpu.memory_space<vmem>>, vector<1x32x32xbf16>
    %327 = vector.shape_cast %326 : vector<1x32x32xbf16> to vector<32x32xbf16>
    %cst_135 = arith.constant dense<0.000000e+00> : vector<8x32xf32>
    %328 = tpu.matmul %325, %327, %cst_135 {dimension_numbers = #tpu.dot_dimension_numbers<[1], [0], [0], [1], [0, 0, 1, 1], [], []>} : vector<8x32xbf16>, vector<32x32xbf16>, vector<8x32xf32> -> vector<8x32xf32>
    %329 = arith.truncf %233 : vector<8x32xf32> to vector<8x32xbf16>
    %c1_136 = arith.constant 1 : index
    %c0_137 = arith.constant 0 : index
    %c0_138 = arith.constant 0 : index
    %330 = vector.load %arg3[%c1_136, %c0_137, %c0_138] : memref<9x32x32xbf16, #tpu.memory_space<vmem>>, vector<1x32x32xbf16>
    %331 = vector.shape_cast %330 : vector<1x32x32xbf16> to vector<32x32xbf16>
    %cst_139 = arith.constant dense<0.000000e+00> : vector<8x32xf32>
    %332 = tpu.matmul %329, %331, %cst_139 {dimension_numbers = #tpu.dot_dimension_numbers<[1], [0], [0], [1], [0, 0, 1, 1], [], []>} : vector<8x32xbf16>, vector<32x32xbf16>, vector<8x32xf32> -> vector<8x32xf32>
    %333 = arith.addf %328, %332 : vector<8x32xf32>
    %334 = arith.truncf %246 : vector<8x32xf32> to vector<8x32xbf16>
    %c2_140 = arith.constant 2 : index
    %c0_141 = arith.constant 0 : index
    %c0_142 = arith.constant 0 : index
    %335 = vector.load %arg3[%c2_140, %c0_141, %c0_142] : memref<9x32x32xbf16, #tpu.memory_space<vmem>>, vector<1x32x32xbf16>
    %336 = vector.shape_cast %335 : vector<1x32x32xbf16> to vector<32x32xbf16>
    %cst_143 = arith.constant dense<0.000000e+00> : vector<8x32xf32>
    %337 = tpu.matmul %334, %336, %cst_143 {dimension_numbers = #tpu.dot_dimension_numbers<[1], [0], [0], [1], [0, 0, 1, 1], [], []>} : vector<8x32xbf16>, vector<32x32xbf16>, vector<8x32xf32> -> vector<8x32xf32>
    %338 = arith.addf %333, %337 : vector<8x32xf32>
    %339 = arith.truncf %259 : vector<8x32xf32> to vector<8x32xbf16>
    %c3_144 = arith.constant 3 : index
    %c0_145 = arith.constant 0 : index
    %c0_146 = arith.constant 0 : index
    %340 = vector.load %arg3[%c3_144, %c0_145, %c0_146] : memref<9x32x32xbf16, #tpu.memory_space<vmem>>, vector<1x32x32xbf16>
    %341 = vector.shape_cast %340 : vector<1x32x32xbf16> to vector<32x32xbf16>
    %cst_147 = arith.constant dense<0.000000e+00> : vector<8x32xf32>
    %342 = tpu.matmul %339, %341, %cst_147 {dimension_numbers = #tpu.dot_dimension_numbers<[1], [0], [0], [1], [0, 0, 1, 1], [], []>} : vector<8x32xbf16>, vector<32x32xbf16>, vector<8x32xf32> -> vector<8x32xf32>
    %343 = arith.addf %338, %342 : vector<8x32xf32>
    %344 = arith.truncf %272 : vector<8x32xf32> to vector<8x32xbf16>
    %c4_148 = arith.constant 4 : index
    %c0_149 = arith.constant 0 : index
    %c0_150 = arith.constant 0 : index
    %345 = vector.load %arg3[%c4_148, %c0_149, %c0_150] : memref<9x32x32xbf16, #tpu.memory_space<vmem>>, vector<1x32x32xbf16>
    %346 = vector.shape_cast %345 : vector<1x32x32xbf16> to vector<32x32xbf16>
    %cst_151 = arith.constant dense<0.000000e+00> : vector<8x32xf32>
    %347 = tpu.matmul %344, %346, %cst_151 {dimension_numbers = #tpu.dot_dimension_numbers<[1], [0], [0], [1], [0, 0, 1, 1], [], []>} : vector<8x32xbf16>, vector<32x32xbf16>, vector<8x32xf32> -> vector<8x32xf32>
    %348 = arith.addf %343, %347 : vector<8x32xf32>
    %349 = arith.truncf %285 : vector<8x32xf32> to vector<8x32xbf16>
    %c5_152 = arith.constant 5 : index
    %c0_153 = arith.constant 0 : index
    %c0_154 = arith.constant 0 : index
    %350 = vector.load %arg3[%c5_152, %c0_153, %c0_154] : memref<9x32x32xbf16, #tpu.memory_space<vmem>>, vector<1x32x32xbf16>
    %351 = vector.shape_cast %350 : vector<1x32x32xbf16> to vector<32x32xbf16>
    %cst_155 = arith.constant dense<0.000000e+00> : vector<8x32xf32>
    %352 = tpu.matmul %349, %351, %cst_155 {dimension_numbers = #tpu.dot_dimension_numbers<[1], [0], [0], [1], [0, 0, 1, 1], [], []>} : vector<8x32xbf16>, vector<32x32xbf16>, vector<8x32xf32> -> vector<8x32xf32>
    %353 = arith.addf %348, %352 : vector<8x32xf32>
    %354 = arith.truncf %298 : vector<8x32xf32> to vector<8x32xbf16>
    %c6_156 = arith.constant 6 : index
    %c0_157 = arith.constant 0 : index
    %c0_158 = arith.constant 0 : index
    %355 = vector.load %arg3[%c6_156, %c0_157, %c0_158] : memref<9x32x32xbf16, #tpu.memory_space<vmem>>, vector<1x32x32xbf16>
    %356 = vector.shape_cast %355 : vector<1x32x32xbf16> to vector<32x32xbf16>
    %cst_159 = arith.constant dense<0.000000e+00> : vector<8x32xf32>
    %357 = tpu.matmul %354, %356, %cst_159 {dimension_numbers = #tpu.dot_dimension_numbers<[1], [0], [0], [1], [0, 0, 1, 1], [], []>} : vector<8x32xbf16>, vector<32x32xbf16>, vector<8x32xf32> -> vector<8x32xf32>
    %358 = arith.addf %353, %357 : vector<8x32xf32>
    %359 = arith.truncf %311 : vector<8x32xf32> to vector<8x32xbf16>
    %c7_160 = arith.constant 7 : index
    %c0_161 = arith.constant 0 : index
    %c0_162 = arith.constant 0 : index
    %360 = vector.load %arg3[%c7_160, %c0_161, %c0_162] : memref<9x32x32xbf16, #tpu.memory_space<vmem>>, vector<1x32x32xbf16>
    %361 = vector.shape_cast %360 : vector<1x32x32xbf16> to vector<32x32xbf16>
    %cst_163 = arith.constant dense<0.000000e+00> : vector<8x32xf32>
    %362 = tpu.matmul %359, %361, %cst_163 {dimension_numbers = #tpu.dot_dimension_numbers<[1], [0], [0], [1], [0, 0, 1, 1], [], []>} : vector<8x32xbf16>, vector<32x32xbf16>, vector<8x32xf32> -> vector<8x32xf32>
    %363 = arith.addf %358, %362 : vector<8x32xf32>
    %364 = arith.truncf %324 : vector<8x32xf32> to vector<8x32xbf16>
    %c8_164 = arith.constant 8 : index
    %c0_165 = arith.constant 0 : index
    %c0_166 = arith.constant 0 : index
    %365 = vector.load %arg3[%c8_164, %c0_165, %c0_166] : memref<9x32x32xbf16, #tpu.memory_space<vmem>>, vector<1x32x32xbf16>
    %366 = vector.shape_cast %365 : vector<1x32x32xbf16> to vector<32x32xbf16>
    %cst_167 = arith.constant dense<0.000000e+00> : vector<8x32xf32>
    %367 = tpu.matmul %364, %366, %cst_167 {dimension_numbers = #tpu.dot_dimension_numbers<[1], [0], [0], [1], [0, 0, 1, 1], [], []>} : vector<8x32xbf16>, vector<32x32xbf16>, vector<8x32xf32> -> vector<8x32xf32>
    %368 = arith.addf %363, %367 : vector<8x32xf32>
    %c0_168 = arith.constant 0 : index
    %c0_169 = arith.constant 0 : index
    %369 = vector.load %arg4[%c0_168, %c0_169] : memref<8x32xf32, #tpu.memory_space<vmem>>, vector<8x32xf32>
    tpu.vector_store %arg4[%c0_168, %c0_169], %368 {strides = array<i32>} : memref<8x32xf32, #tpu.memory_space<vmem>>, vector<8x32xf32>,
    return
  }
  func.func @transform_0(%arg0: i32) -> (i32, i32) {
    %c0_i32 = arith.constant 0 : i32
    %c0_i32_0 = arith.constant 0 : i32
    return %arg0, %c0_i32 : i32, i32
  }
  func.func @transform_1(%arg0: i32) -> (i32, i32, i32) {
    %c0_i32 = arith.constant 0 : i32
    %c0_i32_0 = arith.constant 0 : i32
    %c0_i32_1 = arith.constant 0 : i32
    %c0_i32_2 = arith.constant 0 : i32
    return %c0_i32, %c0_i32_0, %c0_i32_1 : i32, i32, i32
  }
  func.func @transform_2(%arg0: i32) -> (i32, i32, i32) {
    %c0_i32 = arith.constant 0 : i32
    %c0_i32_0 = arith.constant 0 : i32
    %c0_i32_1 = arith.constant 0 : i32
    %c0_i32_2 = arith.constant 0 : i32
    return %c0_i32, %c0_i32_0, %c0_i32_1 : i32, i32, i32
  }
  func.func @transform_3(%arg0: i32) -> (i32, i32) {
    %c0_i32 = arith.constant 0 : i32
    %c0_i32_0 = arith.constant 0 : i32
    return %arg0, %c0_i32 : i32, i32
  }
}

</mosaic_0001>

<llo_original>
// kernel: tpu_custom_call.1
$region0: #{tpu_custom_call.1}
  #allocation0 [shape = 'u32[]', space=smem, size = 0x4, offset = 0x4, fixed_abs, tag = 'smem constant byte address 0x4 - core index']
  #allocation1 [shape = 'u32[144,128]{1,0:T(1,128)}', space=vmem, size = 0x12000, scoped, tag = 'internal scratch']
  %s0 = inlined_call_operand.hbm [shape: f32[8,16], index: 0, kind: input, shape index: {}]
  %s1 = inlined_call_operand.hbm [shape: bf16[9,16,32], index: 1, kind: input, shape index: {}]
  %s2 = inlined_call_operand.hbm [shape: bf16[9,32,32], index: 2, kind: input, shape index: {}]
  %s3 = inlined_call_operand.hbm [shape: f32[8,32], index: 3, kind: output, shape index: {}]
  %s4 = sld [smem:[#allocation0]]
  $region34: #{tpu_custom_call.1} parent=0
    _
  %s6 = ssub.s32 1, %s4
  %s7 = scalar_select 0, %s6, %s4
  $region1: #{tpu_custom_call.1} parent=0
    #allocation2 [shape = 'u8[4096]{0}', space=vmem, size = 0x1000, scoped, tag = 'input window, operand 0, single buffered']
    #allocation3 [shape = 's32[1]{0}', space=sflag, size = 0x4, scoped, tag = 'scoped memory for tpu_custom_call.1']
    #allocation4 [shape = 's32[1]{0}', space=sflag, size = 0x4, scoped, tag = 'scoped memory for tpu_custom_call.1']
    #allocation5 [shape = 'u8[36864]{0}', space=vmem, size = 0x9000, scoped, tag = 'input window, operand 1, single buffered']
    #allocation6 [shape = 's32[1]{0}', space=sflag, size = 0x4, scoped, tag = 'scoped memory for tpu_custom_call.1']
    #allocation7 [shape = 'u8[73728]{0}', space=vmem, size = 0x12000, scoped, tag = 'input window, operand 2, single buffered']
    #allocation8 [shape = 'u8[4096]{0}', space=vmem, size = 0x1000, scoped, tag = 'output window, operand 0, single buffered']
    %8 = vsyncpa [#allocation3], 0
    %9 = vsyncpa [#allocation6], 0
    %10 = vsyncpa [#allocation4], 0
    // Predicated region
    $region2: #{tpu_custom_call.1} parent=1 // pred_check
      _
    $region3: #{tpu_custom_call.1} parent=1 // pred_check_branch
      %12 = sbr.rel (0) target = $region5
    $region4: #{tpu_custom_call.1} parent=1 // pred_region
      %s14 = ssub.s32 128, 128
      %15 = vsyncadd [#allocation3], %s14
      %s17 = sshll.u32 [#allocation2], 4
      %s18 = int_to_ptr.vmem [resolvable:$true] %s17
      %20 = dma.hbm_to_vmem [thread:$0]  %s0, 128, %s18, [#allocation3]
    $region5: #{tpu_custom_call.1} parent=1 // pred_fallthru
      _
    // Predicated region
    $region6: #{tpu_custom_call.1} parent=1 // pred_check
      _
    $region7: #{tpu_custom_call.1} parent=1 // pred_check_branch
      %22 = sbr.rel (0) target = $region9
    $region8: #{tpu_custom_call.1} parent=1 // pred_region
      %s24 = ssub.s32 1152, 1152
      %25 = vsyncadd [#allocation6], %s24
      %s26 = sshll.u32 [#allocation5], 4
      %s27 = int_to_ptr.vmem [resolvable:$true] %s26
      %32 = dma.hbm_to_vmem [thread:$0]  %s1, 1152, %s27, [#allocation6], 64, 64, 4
    $region9: #{tpu_custom_call.1} parent=1 // pred_fallthru
      _
    // Predicated region
    $region10: #{tpu_custom_call.1} parent=1 // pred_check
      _
    $region11: #{tpu_custom_call.1} parent=1 // pred_check_branch
      %34 = sbr.rel (0) target = $region13
    $region12: #{tpu_custom_call.1} parent=1 // pred_region
      %s36 = ssub.s32 2304, 2304
      %37 = vsyncadd [#allocation6], %s36
      %s38 = sshll.u32 [#allocation7], 4
      %s39 = int_to_ptr.vmem [resolvable:$true] %s38
      %44 = dma.hbm_to_vmem [thread:$0]  %s2, 2304, %s39, [#allocation6], 64, 64, 4
    $region13: #{tpu_custom_call.1} parent=1 // pred_fallthru
      _
    // Predicated region
    $region14: #{tpu_custom_call.1} parent=1 // pred_check
      _
    $region15: #{tpu_custom_call.1} parent=1 // pred_check_branch
      %46 = sbr.rel (0) target = $region17
    $region16: #{tpu_custom_call.1} parent=1 // pred_region
      %47 = dma.done [#allocation3], 128
    $region17: #{tpu_custom_call.1} parent=1 // pred_fallthru
      _
    // Predicated region
    $region18: #{tpu_custom_call.1} parent=1 // pred_check
      _
    $region19: #{tpu_custom_call.1} parent=1 // pred_check_branch
      %49 = sbr.rel (0) target = $region21
    $region20: #{tpu_custom_call.1} parent=1 // pred_region
      %50 = dma.done [#allocation6], 1152
    $region21: #{tpu_custom_call.1} parent=1 // pred_fallthru
      _
    // Predicated region
    $region22: #{tpu_custom_call.1} parent=1 // pred_check
      _
    $region23: #{tpu_custom_call.1} parent=1 // pred_check_branch
      %52 = sbr.rel (0) target = $region25
    $region24: #{tpu_custom_call.1} parent=1 // pred_region
      %53 = dma.done [#allocation6], 2304
    $region25: #{tpu_custom_call.1} parent=1 // pred_fallthru
      _
    %v55 = vld [vmem:[#allocation2] sm:$0xff]
    %v56 = vsub.f32 0.0, %v55
    %v57 = vmul.f32 %v56, 1.442695
    %v58 = vpow.pop %v57
    %v59 = vadd.f32 %v58, 1.0
    %v60 = vrcp.pop %v59
    %v61 = vmul.f32 %v55, %v60
    %v62 = vsub.f32 %v55, -2.2
    %v63 = vmul.f32 %v62, 2.5
    %v64 = vfloor.f32 %v63
    %v65 = vsub.f32 %v63, %v64
    %v66 = vmul.f32 %v65, %v65
    %v67 = vmul.f32 %v66, %v65
    %v68 = vmul.f32 %v67, -3.0
    %v69 = vmul.f32 %v66, 3.0
    %v70 = vadd.f32 %v68, %v69
    %v71 = vmul.f32 %v65, 3.0
    %v72 = vadd.f32 %v70, %v71
    %v73 = vadd.f32 %v72, 1.0
    %v74 = vmul.f32 %v67, 3.0
    %v75 = vmul.f32 %v66, 6.0
    %v76 = vsub.f32 %v74, %v75
    %v77 = vadd.f32 %v76, 4.0
    %v78 = vsub.f32 1.0, %v65
    %v79 = vmul.f32 %v78, %v78
    %v80 = vmul.f32 %v79, %v78
    %vm81 = vcmp.eq.f32.partialorder %v64, 0.0
    %vm82 = vcmp.eq.f32.partialorder %v64, 1.0
    %vm83 = vcmp.eq.f32.partialorder %v64, 2.0
    %vm84 = vcmp.eq.f32.partialorder %v64, 3.0
    %v85 = vsel %vm84, %v80, 0.0
    %v86 = vsel %vm83, %v77, %v85
    %v87 = vsel %vm82, %v73, %v86
    %v88 = vsel %vm81, %v67, %v87
    %vm89 = vcmp.eq.f32.partialorder %v64, 4.0
    %v90 = vsel %vm89, %v80, 0.0
    %v91 = vsel %vm84, %v77, %v90
    %v92 = vsel %vm83, %v73, %v91
    %v93 = vsel %vm82, %v67, %v92
    %vm94 = vcmp.eq.f32.partialorder %v64, 5.0
    %v95 = vsel %vm94, %v80, 0.0
    %v96 = vsel %vm89, %v77, %v95
    %v97 = vsel %vm84, %v73, %v96
    %v98 = vsel %vm83, %v67, %v97
    %vm99 = vcmp.eq.f32.partialorder %v64, 6.0
    %v100 = vsel %vm99, %v80, 0.0
    %v101 = vsel %vm94, %v77, %v100
    %v102 = vsel %vm89, %v73, %v101
    %v103 = vsel %vm84, %v67, %v102
    %vm104 = vcmp.eq.f32.partialorder %v64, 7.0
    %v105 = vsel %vm104, %v80, 0.0
    %v106 = vsel %vm99, %v77, %v105
    %v107 = vsel %vm94, %v73, %v106
    %v108 = vsel %vm89, %v67, %v107
    %vm109 = vcmp.eq.f32.partialorder %v64, 8.0
    %v110 = vsel %vm109, %v80, 0.0
    %v111 = vsel %vm104, %v77, %v110
    %v112 = vsel %vm99, %v73, %v111
    %v113 = vsel %vm94, %v67, %v112
    %vm114 = vcmp.eq.f32.partialorder %v64, 9.0
    %v115 = vsel %vm114, %v80, 0.0
    %v116 = vsel %vm109, %v77, %v115
    %v117 = vsel %vm104, %v73, %v116
    %v118 = vsel %vm99, %v67, %v117
    %vm119 = vcmp.eq.f32.partialorder %v64, 10.0
    %v120 = vsel %vm119, %v80, 0.0
    %v121 = vsel %vm114, %v77, %v120
    %v122 = vsel %vm109, %v73, %v121
    %v123 = vsel %vm104, %v67, %v122
    %v124 = vpack.c.bf16 %v61, %v61
    %v125 = vld [vmem:[#allocation5] sm:$0xf]
    %v126 = vld [vmem:[#allocation5 + $0x4] sm:$0xf]
    %v127 = vpack.c.bf16 %v88, %v88
    %s128 = scalar_lea.vmem [#allocation5], 8
    %v129 = vld [vmem:[%s128] sm:$0xf]
    %v130 = vld [vmem:[%s128 + $0x4] sm:$0xf]
    %v133 = vunpack.c.l.b16 %v129
    %v134 = vunpack.c.l.b16 %v130
    %v135 = vpack.c.b16 %v134, %v133
    %vm137 = vcmask 130048
    %v139 = vsel %vm137, %v127, 0
    %141 = vmatprep.subr.bf16.mxu0 0
    %142 = vmatpush1.bf16.msra.mxu0 %v135
    %143 = vmatprep.subr.bf16.mxu0 0
    %144 = vmatpush1.bf16.msra.mxu0 0
    %145 = vmatprep.subr.bf16.mxu0 0
    %146 = vmatpush1.bf16.msra.mxu0 0
    %147 = vmatprep.subr.bf16.mxu0 0
    %148 = vmatpush1.bf16.msra.mxu0 0
    %149 = vmatprep.subr.bf16.mxu0 0
    %150 = vmatpush1.bf16.msra.mxu0 0
    %151 = vmatprep.subr.bf16.mxu0 0
    %152 = vmatpush1.bf16.msra.mxu0 0
    %153 = vmatprep.subr.bf16.mxu0 0
    %154 = vmatpush1.bf16.msra.mxu0 0
    %155 = vmatprep.subr.bf16.mxu0 0
    %156 = vmatpush1.bf16.msra.mxu0 0
    %157 = vmatprep.subr.bf16.mxu0 0
    %158 = vmatpush1.bf16.msra.mxu0 0
    %159 = vmatprep.subr.bf16.mxu0 0
    %160 = vmatpush1.bf16.msra.mxu0 0
    %161 = vmatprep.subr.bf16.mxu0 0
    %162 = vmatpush1.bf16.msra.mxu0 0
    %163 = vmatprep.subr.bf16.mxu0 0
    %164 = vmatpush1.bf16.msra.mxu0 0
    %165 = vmatprep.subr.bf16.mxu0 0
    %166 = vmatpush1.bf16.msra.mxu0 0
    %167 = vmatprep.subr.bf16.mxu0 0
    %168 = vmatpush1.bf16.msra.mxu0 0
    %169 = vmatprep.subr.bf16.mxu0 0
    %170 = vmatpush1.bf16.msra.mxu0 0
    %171 = vmatprep.subr.bf16.mxu0 0
    %172 = vmatpush1.bf16.msra.mxu0 0
    %173 = vmatprep.mubr.bf16.mxu0 0
    %174 = vmatmul.mubr.bf16.gmra.mrb[0].mxu0 %v139
    %v175 = vpop.f32.mrb[0].mxu0
    %v176 = vadd.f32 0.0, %v175
    %v177 = vpop.f32.mrb[0].mxu0
    %v178 = vpop.f32.mrb[0].mxu0
    %v179 = vpop.f32.mrb[0].mxu0
    %180 = vdwg.mxu0
    %v183 = vunpack.c.l.b16 %v125
    %v184 = vunpack.c.l.b16 %v126
    %v185 = vpack.c.b16 %v184, %v183
    %v188 = vsel %vm137, %v124, 0
    %190 = vmatprep.subr.bf16.mxu0 0
    %191 = vmatpush1.bf16.msra.mxu0 %v185
    %192 = vmatprep.subr.bf16.mxu0 0
    %193 = vmatpush1.bf16.msra.mxu0 0
    %194 = vmatprep.subr.bf16.mxu0 0
    %195 = vmatpush1.bf16.msra.mxu0 0
    %196 = vmatprep.subr.bf16.mxu0 0
    %197 = vmatpush1.bf16.msra.mxu0 0
    %198 = vmatprep.subr.bf16.mxu0 0
    %199 = vmatpush1.bf16.msra.mxu0 0
    %200 = vmatprep.subr.bf16.mxu0 0
    %201 = vmatpush1.bf16.msra.mxu0 0
    %202 = vmatprep.subr.bf16.mxu0 0
    %203 = vmatpush1.bf16.msra.mxu0 0
    %204 = vmatprep.subr.bf16.mxu0 0
    %205 = vmatpush1.bf16.msra.mxu0 0
    %206 = vmatprep.subr.bf16.mxu0 0
    %207 = vmatpush1.bf16.msra.mxu0 0
    %208 = vmatprep.subr.bf16.mxu0 0
    %209 = vmatpush1.bf16.msra.mxu0 0
    %210 = vmatprep.subr.bf16.mxu0 0
    %211 = vmatpush1.bf16.msra.mxu0 0
    %212 = vmatprep.subr.bf16.mxu0 0
    %213 = vmatpush1.bf16.msra.mxu0 0
    %214 = vmatprep.subr.bf16.mxu0 0
    %215 = vmatpush1.bf16.msra.mxu0 0
    %216 = vmatprep.subr.bf16.mxu0 0
    %217 = vmatpush1.bf16.msra.mxu0 0
    %218 = vmatprep.subr.bf16.mxu0 0
    %219 = vmatpush1.bf16.msra.mxu0 0
    %220 = vmatprep.subr.bf16.mxu0 0
    %221 = vmatpush1.bf16.msra.mxu0 0
    %222 = vmatprep.mubr.bf16.mxu0 0
    %223 = vmatmul.mubr.bf16.gmra.mrb[0].mxu0 %v188
    %v224 = vpop.f32.mrb[0].mxu0
    %v225 = vadd.f32 %v176, %v224
    %v226 = vpop.f32.mrb[0].mxu0
    %v227 = vpop.f32.mrb[0].mxu0
    %v228 = vpop.f32.mrb[0].mxu0
    %229 = vdwg.mxu0
    %v230 = vpack.c.bf16 %v93, %v93
    %s231 = scalar_lea.vmem [#allocation5], 16
    %v232 = vld [vmem:[%s231] sm:$0xf]
    %v233 = vld [vmem:[%s231 + $0x4] sm:$0xf]
    %v236 = vunpack.c.l.b16 %v232
    %v237 = vunpack.c.l.b16 %v233
    %v238 = vpack.c.b16 %v237, %v236
    %v241 = vsel %vm137, %v230, 0
    %243 = vmatprep.subr.bf16.mxu0 0
    %244 = vmatpush1.bf16.msra.mxu0 %v238
    %245 = vmatprep.subr.bf16.mxu0 0
    %246 = vmatpush1.bf16.msra.mxu0 0
    %247 = vmatprep.subr.bf16.mxu0 0
    %248 = vmatpush1.bf16.msra.mxu0 0
    %249 = vmatprep.subr.bf16.mxu0 0
    %250 = vmatpush1.bf16.msra.mxu0 0
    %251 = vmatprep.subr.bf16.mxu0 0
    %252 = vmatpush1.bf16.msra.mxu0 0
    %253 = vmatprep.subr.bf16.mxu0 0
    %254 = vmatpush1.bf16.msra.mxu0 0
    %255 = vmatprep.subr.bf16.mxu0 0
    %256 = vmatpush1.bf16.msra.mxu0 0
    %257 = vmatprep.subr.bf16.mxu0 0
    %258 = vmatpush1.bf16.msra.mxu0 0
    %259 = vmatprep.subr.bf16.mxu0 0
    %260 = vmatpush1.bf16.msra.mxu0 0
    %261 = vmatprep.subr.bf16.mxu0 0
    %262 = vmatpush1.bf16.msra.mxu0 0
    %263 = vmatprep.subr.bf16.mxu0 0
    %264 = vmatpush1.bf16.msra.mxu0 0
    %265 = vmatprep.subr.bf16.mxu0 0
    %266 = vmatpush1.bf16.msra.mxu0 0
    %267 = vmatprep.subr.bf16.mxu0 0
    %268 = vmatpush1.bf16.msra.mxu0 0
    %269 = vmatprep.subr.bf16.mxu0 0
    %270 = vmatpush1.bf16.msra.mxu0 0
    %271 = vmatprep.subr.bf16.mxu0 0
    %272 = vmatpush1.bf16.msra.mxu0 0
    %273 = vmatprep.subr.bf16.mxu0 0
    %274 = vmatpush1.bf16.msra.mxu0 0
    %275 = vmatprep.mubr.bf16.mxu0 0
    %276 = vmatmul.mubr.bf16.gmra.mrb[0].mxu0 %v241
    %v277 = vpop.f32.mrb[0].mxu0
    %v278 = vadd.f32 0.0, %v277
    %v279 = vpop.f32.mrb[0].mxu0
    %v280 = vpop.f32.mrb[0].mxu0
    %v281 = vpop.f32.mrb[0].mxu0
    %282 = vdwg.mxu0
    %v283 = vadd.f32 %v225, %v278
    %v284 = vpack.c.bf16 %v98, %v98
    %s285 = scalar_lea.vmem [#allocation5], 24
    %v286 = vld [vmem:[%s285] sm:$0xf]
    %v287 = vld [vmem:[%s285 + $0x4] sm:$0xf]
    %v290 = vunpack.c.l.b16 %v286
    %v291 = vunpack.c.l.b16 %v287
    %v292 = vpack.c.b16 %v291, %v290
    %v295 = vsel %vm137, %v284, 0
    %297 = vmatprep.subr.bf16.mxu0 0
    %298 = vmatpush1.bf16.msra.mxu0 %v292
    %299 = vmatprep.subr.bf16.mxu0 0
    %300 = vmatpush1.bf16.msra.mxu0 0
    %301 = vmatprep.subr.bf16.mxu0 0
    %302 = vmatpush1.bf16.msra.mxu0 0
    %303 = vmatprep.subr.bf16.mxu0 0
    %304 = vmatpush1.bf16.msra.mxu0 0
    %305 = vmatprep.subr.bf16.mxu0 0
    %306 = vmatpush1.bf16.msra.mxu0 0
    %307 = vmatprep.subr.bf16.mxu0 0
    %308 = vmatpush1.bf16.msra.mxu0 0
    %309 = vmatprep.subr.bf16.mxu0 0
    %310 = vmatpush1.bf16.msra.mxu0 0
    %311 = vmatprep.subr.bf16.mxu0 0
    %312 = vmatpush1.bf16.msra.mxu0 0
    %313 = vmatprep.subr.bf16.mxu0 0
    %314 = vmatpush1.bf16.msra.mxu0 0
    %315 = vmatprep.subr.bf16.mxu0 0
    %316 = vmatpush1.bf16.msra.mxu0 0
    %317 = vmatprep.subr.bf16.mxu0 0
    %318 = vmatpush1.bf16.msra.mxu0 0
    %319 = vmatprep.subr.bf16.mxu0 0
    %320 = vmatpush1.bf16.msra.mxu0 0
    %321 = vmatprep.subr.bf16.mxu0 0
    %322 = vmatpush1.bf16.msra.mxu0 0
    %323 = vmatprep.subr.bf16.mxu0 0
    %324 = vmatpush1.bf16.msra.mxu0 0
    %325 = vmatprep.subr.bf16.mxu0 0
    %326 = vmatpush1.bf16.msra.mxu0 0
    %327 = vmatprep.subr.bf16.mxu0 0
    %328 = vmatpush1.bf16.msra.mxu0 0
    %329 = vmatprep.mubr.bf16.mxu0 0
    %330 = vmatmul.mubr.bf16.gmra.mrb[0].mxu0 %v295
    %v331 = vpop.f32.mrb[0].mxu0
    %v332 = vadd.f32 0.0, %v331
    %v333 = vpop.f32.mrb[0].mxu0
    %v334 = vpop.f32.mrb[0].mxu0
    %v335 = vpop.f32.mrb[0].mxu0
    %336 = vdwg.mxu0
    %v337 = vadd.f32 %v283, %v332
    %v338 = vpack.c.bf16 %v103, %v103
    %s339 = scalar_lea.vmem [#allocation5], 32
    %v340 = vld [vmem:[%s339] sm:$0xf]
    %v341 = vld [vmem:[%s339 + $0x4] sm:$0xf]
    %v344 = vunpack.c.l.b16 %v340
    %v345 = vunpack.c.l.b16 %v341
    %v346 = vpack.c.b16 %v345, %v344
    %v349 = vsel %vm137, %v338, 0
    %351 = vmatprep.subr.bf16.mxu0 0
    %352 = vmatpush1.bf16.msra.mxu0 %v346
    %353 = vmatprep.subr.bf16.mxu0 0
    %354 = vmatpush1.bf16.msra.mxu0 0
    %355 = vmatprep.subr.bf16.mxu0 0
    %356 = vmatpush1.bf16.msra.mxu0 0
    %357 = vmatprep.subr.bf16.mxu0 0
    %358 = vmatpush1.bf16.msra.mxu0 0
    %359 = vmatprep.subr.bf16.mxu0 0
    %360 = vmatpush1.bf16.msra.mxu0 0
    %361 = vmatprep.subr.bf16.mxu0 0
    %362 = vmatpush1.bf16.msra.mxu0 0
    %363 = vmatprep.subr.bf16.mxu0 0
    %364 = vmatpush1.bf16.msra.mxu0 0
    %365 = vmatprep.subr.bf16.mxu0 0
    %366 = vmatpush1.bf16.msra.mxu0 0
    %367 = vmatprep.subr.bf16.mxu0 0
    %368 = vmatpush1.bf16.msra.mxu0 0
    %369 = vmatprep.subr.bf16.mxu0 0
    %370 = vmatpush1.bf16.msra.mxu0 0
    %371 = vmatprep.subr.bf16.mxu0 0
    %372 = vmatpush1.bf16.msra.mxu0 0
    %373 = vmatprep.subr.bf16.mxu0 0
    %374 = vmatpush1.bf16.msra.mxu0 0
    %375 = vmatprep.subr.bf16.mxu0 0
    %376 = vmatpush1.bf16.msra.mxu0 0
    %377 = vmatprep.subr.bf16.mxu0 0
    %378 = vmatpush1.bf16.msra.mxu0 0
    %379 = vmatprep.subr.bf16.mxu0 0
    %380 = vmatpush1.bf16.msra.mxu0 0
    %381 = vmatprep.subr.bf16.mxu0 0
    %382 = vmatpush1.bf16.msra.mxu0 0
    %383 = vmatprep.mubr.bf16.mxu0 0
    %384 = vmatmul.mubr.bf16.gmra.mrb[0].mxu0 %v349
    %v385 = vpop.f32.mrb[0].mxu0
    %v386 = vadd.f32 0.0, %v385
    %v387 = vpop.f32.mrb[0].mxu0
    %v388 = vpop.f32.mrb[0].mxu0
    %v389 = vpop.f32.mrb[0].mxu0
    %390 = vdwg.mxu0
    %v391 = vadd.f32 %v337, %v386
    %v392 = vpack.c.bf16 %v108, %v108
    %s393 = scalar_lea.vmem [#allocation5], 40
    %v394 = vld [vmem:[%s393] sm:$0xf]
    %v395 = vld [vmem:[%s393 + $0x4] sm:$0xf]
    %v398 = vunpack.c.l.b16 %v394
    %v399 = vunpack.c.l.b16 %v395
    %v400 = vpack.c.b16 %v399, %v398
    %v403 = vsel %vm137, %v392, 0
    %405 = vmatprep.subr.bf16.mxu0 0
    %406 = vmatpush1.bf16.msra.mxu0 %v400
    %407 = vmatprep.subr.bf16.mxu0 0
    %408 = vmatpush1.bf16.msra.mxu0 0
    %409 = vmatprep.subr.bf16.mxu0 0
    %410 = vmatpush1.bf16.msra.mxu0 0
    %411 = vmatprep.subr.bf16.mxu0 0
    %412 = vmatpush1.bf16.msra.mxu0 0
    %413 = vmatprep.subr.bf16.mxu0 0
    %414 = vmatpush1.bf16.msra.mxu0 0
    %415 = vmatprep.subr.bf16.mxu0 0
    %416 = vmatpush1.bf16.msra.mxu0 0
    %417 = vmatprep.subr.bf16.mxu0 0
    %418 = vmatpush1.bf16.msra.mxu0 0
    %419 = vmatprep.subr.bf16.mxu0 0
    %420 = vmatpush1.bf16.msra.mxu0 0
    %421 = vmatprep.subr.bf16.mxu0 0
    %422 = vmatpush1.bf16.msra.mxu0 0
    %423 = vmatprep.subr.bf16.mxu0 0
    %424 = vmatpush1.bf16.msra.mxu0 0
    %425 = vmatprep.subr.bf16.mxu0 0
    %426 = vmatpush1.bf16.msra.mxu0 0
    %427 = vmatprep.subr.bf16.mxu0 0
    %428 = vmatpush1.bf16.msra.mxu0 0
    %429 = vmatprep.subr.bf16.mxu0 0
    %430 = vmatpush1.bf16.msra.mxu0 0
    %431 = vmatprep.subr.bf16.mxu0 0
    %432 = vmatpush1.bf16.msra.mxu0 0
    %433 = vmatprep.subr.bf16.mxu0 0
    %434 = vmatpush1.bf16.msra.mxu0 0
    %435 = vmatprep.subr.bf16.mxu0 0
    %436 = vmatpush1.bf16.msra.mxu0 0
    %437 = vmatprep.mubr.bf16.mxu0 0
    %438 = vmatmul.mubr.bf16.gmra.mrb[0].mxu0 %v403
    %v439 = vpop.f32.mrb[0].mxu0
    %v440 = vadd.f32 0.0, %v439
    %v441 = vpop.f32.mrb[0].mxu0
    %v442 = vpop.f32.mrb[0].mxu0
    %v443 = vpop.f32.mrb[0].mxu0
    %444 = vdwg.mxu0
    %v445 = vadd.f32 %v391, %v440
    %v446 = vpack.c.bf16 %v113, %v113
    %s447 = scalar_lea.vmem [#allocation5], 48
    %v448 = vld [vmem:[%s447] sm:$0xf]
    %v449 = vld [vmem:[%s447 + $0x4] sm:$0xf]
    %v452 = vunpack.c.l.b16 %v448
    %v453 = vunpack.c.l.b16 %v449
    %v454 = vpack.c.b16 %v453, %v452
    %v457 = vsel %vm137, %v446, 0
    %459 = vmatprep.subr.bf16.mxu0 0
    %460 = vmatpush1.bf16.msra.mxu0 %v454
    %461 = vmatprep.subr.bf16.mxu0 0
    %462 = vmatpush1.bf16.msra.mxu0 0
    %463 = vmatprep.subr.bf16.mxu0 0
    %464 = vmatpush1.bf16.msra.mxu0 0
    %465 = vmatprep.subr.bf16.mxu0 0
    %466 = vmatpush1.bf16.msra.mxu0 0
    %467 = vmatprep.subr.bf16.mxu0 0
    %468 = vmatpush1.bf16.msra.mxu0 0
    %469 = vmatprep.subr.bf16.mxu0 0
    %470 = vmatpush1.bf16.msra.mxu0 0
    %471 = vmatprep.subr.bf16.mxu0 0
    %472 = vmatpush1.bf16.msra.mxu0 0
    %473 = vmatprep.subr.bf16.mxu0 0
    %474 = vmatpush1.bf16.msra.mxu0 0
    %475 = vmatprep.subr.bf16.mxu0 0
    %476 = vmatpush1.bf16.msra.mxu0 0
    %477 = vmatprep.subr.bf16.mxu0 0
    %478 = vmatpush1.bf16.msra.mxu0 0
    %479 = vmatprep.subr.bf16.mxu0 0
    %480 = vmatpush1.bf16.msra.mxu0 0
    %481 = vmatprep.subr.bf16.mxu0 0
    %482 = vmatpush1.bf16.msra.mxu0 0
    %483 = vmatprep.subr.bf16.mxu0 0
    %484 = vmatpush1.bf16.msra.mxu0 0
    %485 = vmatprep.subr.bf16.mxu0 0
    %486 = vmatpush1.bf16.msra.mxu0 0
    %487 = vmatprep.subr.bf16.mxu0 0
    %488 = vmatpush1.bf16.msra.mxu0 0
    %489 = vmatprep.subr.bf16.mxu0 0
    %490 = vmatpush1.bf16.msra.mxu0 0
    %491 = vmatprep.mubr.bf16.mxu0 0
    %492 = vmatmul.mubr.bf16.gmra.mrb[0].mxu0 %v457
    %v493 = vpop.f32.mrb[0].mxu0
    %v494 = vadd.f32 0.0, %v493
    %v495 = vpop.f32.mrb[0].mxu0
    %v496 = vpop.f32.mrb[0].mxu0
    %v497 = vpop.f32.mrb[0].mxu0
    %498 = vdwg.mxu0
    %v499 = vadd.f32 %v445, %v494
    %v500 = vpack.c.bf16 %v118, %v118
    %s501 = scalar_lea.vmem [#allocation5], 56
    %v502 = vld [vmem:[%s501] sm:$0xf]
    %v503 = vld [vmem:[%s501 + $0x4] sm:$0xf]
    %v506 = vunpack.c.l.b16 %v502
    %v507 = vunpack.c.l.b16 %v503
    %v508 = vpack.c.b16 %v507, %v506
    %v511 = vsel %vm137, %v500, 0
    %513 = vmatprep.subr.bf16.mxu0 0
    %514 = vmatpush1.bf16.msra.mxu0 %v508
    %515 = vmatprep.subr.bf16.mxu0 0
    %516 = vmatpush1.bf16.msra.mxu0 0
    %517 = vmatprep.subr.bf16.mxu0 0
    %518 = vmatpush1.bf16.msra.mxu0 0
    %519 = vmatprep.subr.bf16.mxu0 0
    %520 = vmatpush1.bf16.msra.mxu0 0
    %521 = vmatprep.subr.bf16.mxu0 0
    %522 = vmatpush1.bf16.msra.mxu0 0
    %523 = vmatprep.subr.bf16.mxu0 0
    %524 = vmatpush1.bf16.msra.mxu0 0
    %525 = vmatprep.subr.bf16.mxu0 0
    %526 = vmatpush1.bf16.msra.mxu0 0
    %527 = vmatprep.subr.bf16.mxu0 0
    %528 = vmatpush1.bf16.msra.mxu0 0
    %529 = vmatprep.subr.bf16.mxu0 0
    %530 = vmatpush1.bf16.msra.mxu0 0
    %531 = vmatprep.subr.bf16.mxu0 0
    %532 = vmatpush1.bf16.msra.mxu0 0
    %533 = vmatprep.subr.bf16.mxu0 0
    %534 = vmatpush1.bf16.msra.mxu0 0
    %535 = vmatprep.subr.bf16.mxu0 0
    %536 = vmatpush1.bf16.msra.mxu0 0
    %537 = vmatprep.subr.bf16.mxu0 0
    %538 = vmatpush1.bf16.msra.mxu0 0
    %539 = vmatprep.subr.bf16.mxu0 0
    %540 = vmatpush1.bf16.msra.mxu0 0
    %541 = vmatprep.subr.bf16.mxu0 0
    %542 = vmatpush1.bf16.msra.mxu0 0
    %543 = vmatprep.subr.bf16.mxu0 0
    %544 = vmatpush1.bf16.msra.mxu0 0
    %545 = vmatprep.mubr.bf16.mxu0 0
    %546 = vmatmul.mubr.bf16.gmra.mrb[0].mxu0 %v511
    %v547 = vpop.f32.mrb[0].mxu0
    %v548 = vadd.f32 0.0, %v547
    %v549 = vpop.f32.mrb[0].mxu0
    %v550 = vpop.f32.mrb[0].mxu0
    %v551 = vpop.f32.mrb[0].mxu0
    %552 = vdwg.mxu0
    %v553 = vadd.f32 %v499, %v548
    %v554 = vpack.c.bf16 %v123, %v123
    %s555 = scalar_lea.vmem [#allocation5], 64
    %v556 = vld [vmem:[%s555] sm:$0xf]
    %v557 = vld [vmem:[%s555 + $0x4] sm:$0xf]
    %v560 = vunpack.c.l.b16 %v556
    %v561 = vunpack.c.l.b16 %v557
    %v562 = vpack.c.b16 %v561, %v560
    %v565 = vsel %vm137, %v554, 0
    %567 = vmatprep.subr.bf16.mxu0 0
    %568 = vmatpush1.bf16.msra.mxu0 %v562
    %569 = vmatprep.subr.bf16.mxu0 0
    %570 = vmatpush1.bf16.msra.mxu0 0
    %571 = vmatprep.subr.bf16.mxu0 0
    %572 = vmatpush1.bf16.msra.mxu0 0
    %573 = vmatprep.subr.bf16.mxu0 0
    %574 = vmatpush1.bf16.msra.mxu0 0
    %575 = vmatprep.subr.bf16.mxu0 0
    %576 = vmatpush1.bf16.msra.mxu0 0
    %577 = vmatprep.subr.bf16.mxu0 0
    %578 = vmatpush1.bf16.msra.mxu0 0
    %579 = vmatprep.subr.bf16.mxu0 0
    %580 = vmatpush1.bf16.msra.mxu0 0
    %581 = vmatprep.subr.bf16.mxu0 0
    %582 = vmatpush1.bf16.msra.mxu0 0
    %583 = vmatprep.subr.bf16.mxu0 0
    %584 = vmatpush1.bf16.msra.mxu0 0
    %585 = vmatprep.subr.bf16.mxu0 0
    %586 = vmatpush1.bf16.msra.mxu0 0
    %587 = vmatprep.subr.bf16.mxu0 0
    %588 = vmatpush1.bf16.msra.mxu0 0
    %589 = vmatprep.subr.bf16.mxu0 0
    %590 = vmatpush1.bf16.msra.mxu0 0
    %591 = vmatprep.subr.bf16.mxu0 0
    %592 = vmatpush1.bf16.msra.mxu0 0
    %593 = vmatprep.subr.bf16.mxu0 0
    %594 = vmatpush1.bf16.msra.mxu0 0
    %595 = vmatprep.subr.bf16.mxu0 0
    %596 = vmatpush1.bf16.msra.mxu0 0
    %597 = vmatprep.subr.bf16.mxu0 0
    %598 = vmatpush1.bf16.msra.mxu0 0
    %599 = vmatprep.mubr.bf16.mxu0 0
    %600 = vmatmul.mubr.bf16.gmra.mrb[0].mxu0 %v565
    %v601 = vpop.f32.mrb[0].mxu0
    %v602 = vadd.f32 0.0, %v601
    %v603 = vpop.f32.mrb[0].mxu0
    %v604 = vpop.f32.mrb[0].mxu0
    %v605 = vpop.f32.mrb[0].mxu0
    %606 = vdwg.mxu0
    %v607 = vadd.f32 %v553, %v602
    %v608 = vsub.f32 0.0, %v607
    %v609 = vmul.f32 %v608, 1.442695
    %v610 = vpow.pop %v609
    %v611 = vadd.f32 %v610, 1.0
    %v612 = vrcp.pop %v611
    %v613 = vmul.f32 %v607, %v612
    %v614 = vsub.f32 %v607, -2.2
    %v615 = vmul.f32 %v614, 2.5
    %v616 = vfloor.f32 %v615
    %v617 = vsub.f32 %v615, %v616
    %v618 = vmul.f32 %v617, %v617
    %v619 = vmul.f32 %v618, %v617
    %v620 = vmul.f32 %v619, -3.0
    %v621 = vmul.f32 %v618, 3.0
    %v622 = vadd.f32 %v620, %v621
    %v623 = vmul.f32 %v617, 3.0
    %v624 = vadd.f32 %v622, %v623
    %v625 = vadd.f32 %v624, 1.0
    %v626 = vmul.f32 %v619, 3.0
    %v627 = vmul.f32 %v618, 6.0
    %v628 = vsub.f32 %v626, %v627
    %v629 = vadd.f32 %v628, 4.0
    %v630 = vsub.f32 1.0, %v617
    %v631 = vmul.f32 %v630, %v630
    %v632 = vmul.f32 %v631, %v630
    %vm633 = vcmp.eq.f32.partialorder %v616, 0.0
    %vm634 = vcmp.eq.f32.partialorder %v616, 1.0
    %vm635 = vcmp.eq.f32.partialorder %v616, 2.0
    %vm636 = vcmp.eq.f32.partialorder %v616, 3.0
    %v637 = vsel %vm636, %v632, 0.0
    %v638 = vsel %vm635, %v629, %v637
    %v639 = vsel %vm634, %v625, %v638
    %v640 = vsel %vm633, %v619, %v639
    %vm641 = vcmp.eq.f32.partialorder %v616, 4.0
    %v642 = vsel %vm641, %v632, 0.0
    %v643 = vsel %vm636, %v629, %v642
    %v644 = vsel %vm635, %v625, %v643
    %v645 = vsel %vm634, %v619, %v644
    %vm646 = vcmp.eq.f32.partialorder %v616, 5.0
    %v647 = vsel %vm646, %v632, 0.0
    %v648 = vsel %vm641, %v629, %v647
    %v649 = vsel %vm636, %v625, %v648
    %v650 = vsel %vm635, %v619, %v649
    %vm651 = vcmp.eq.f32.partialorder %v616, 6.0
    %v652 = vsel %vm651, %v632, 0.0
    %v653 = vsel %vm646, %v629, %v652
    %v654 = vsel %vm641, %v625, %v653
    %v655 = vsel %vm636, %v619, %v654
    %vm656 = vcmp.eq.f32.partialorder %v616, 7.0
    %v657 = vsel %vm656, %v632, 0.0
    %v658 = vsel %vm651, %v629, %v657
    %v659 = vsel %vm646, %v625, %v658
    %v660 = vsel %vm641, %v619, %v659
    %vm661 = vcmp.eq.f32.partialorder %v616, 8.0
    %v662 = vsel %vm661, %v632, 0.0
    %v663 = vsel %vm656, %v629, %v662
    %v664 = vsel %vm651, %v625, %v663
    %v665 = vsel %vm646, %v619, %v664
    %vm666 = vcmp.eq.f32.partialorder %v616, 9.0
    %v667 = vsel %vm666, %v632, 0.0
    %v668 = vsel %vm661, %v629, %v667
    %v669 = vsel %vm656, %v625, %v668
    %v670 = vsel %vm651, %v619, %v669
    %vm671 = vcmp.eq.f32.partialorder %v616, 10.0
    %v672 = vsel %vm671, %v632, 0.0
    %v673 = vsel %vm666, %v629, %v672
    %v674 = vsel %vm661, %v625, %v673
    %v675 = vsel %vm656, %v619, %v674
    %v676 = vpack.c.bf16 %v613, %v613
    %v677 = vld [vmem:[#allocation7] sm:$0xf]
    %v678 = vld [vmem:[#allocation7 + $0x4] sm:$0xf]
    %v679 = vld [vmem:[#allocation7 + $0x8] sm:$0xf]
    %v680 = vld [vmem:[#allocation7 + $0xc] sm:$0xf]
    %v681 = vpack.c.bf16 %v640, %v640
    %s682 = scalar_lea.vmem [#allocation7], 16
    %v683 = vld [vmem:[%s682] sm:$0xf]
    %v684 = vld [vmem:[%s682 + $0x4] sm:$0xf]
    %v685 = vld [vmem:[%s682 + $0x8] sm:$0xf]
    %v686 = vld [vmem:[%s682 + $0xc] sm:$0xf]
    %v691 = vunpack.c.l.b16 %v683
    %v692 = vunpack.c.l.b16 %v684
    %v693 = vunpack.c.l.b16 %v685
    %v694 = vunpack.c.l.b16 %v686
    %v695 = vpack.c.b16 %v692, %v691
    %v696 = vpack.c.b16 %v694, %v693
    %vm699 = vcmask 261120
    %v701 = vsel %vm699, %v681, 0
    %703 = vmatprep.subr.bf16.mxu0 0
    %704 = vmatpush1.bf16.msra.mxu0 %v695
    %705 = vmatprep.subr.bf16.mxu0 0
    %706 = vmatpush1.bf16.msra.mxu0 %v696
    %707 = vmatprep.subr.bf16.mxu0 0
    %708 = vmatpush1.bf16.msra.mxu0 0
    %709 = vmatprep.subr.bf16.mxu0 0
    %710 = vmatpush1.bf16.msra.mxu0 0
    %711 = vmatprep.subr.bf16.mxu0 0
    %712 = vmatpush1.bf16.msra.mxu0 0
    %713 = vmatprep.subr.bf16.mxu0 0
    %714 = vmatpush1.bf16.msra.mxu0 0
    %715 = vmatprep.subr.bf16.mxu0 0
    %716 = vmatpush1.bf16.msra.mxu0 0
    %717 = vmatprep.subr.bf16.mxu0 0
    %718 = vmatpush1.bf16.msra.mxu0 0
    %719 = vmatprep.subr.bf16.mxu0 0
    %720 = vmatpush1.bf16.msra.mxu0 0
    %721 = vmatprep.subr.bf16.mxu0 0
    %722 = vmatpush1.bf16.msra.mxu0 0
    %723 = vmatprep.subr.bf16.mxu0 0
    %724 = vmatpush1.bf16.msra.mxu0 0
    %725 = vmatprep.subr.bf16.mxu0 0
    %726 = vmatpush1.bf16.msra.mxu0 0
    %727 = vmatprep.subr.bf16.mxu0 0
    %728 = vmatpush1.bf16.msra.mxu0 0
    %729 = vmatprep.subr.bf16.mxu0 0
    %730 = vmatpush1.bf16.msra.mxu0 0
    %731 = vmatprep.subr.bf16.mxu0 0
    %732 = vmatpush1.bf16.msra.mxu0 0
    %733 = vmatprep.subr.bf16.mxu0 0
    %734 = vmatpush1.bf16.msra.mxu0 0
    %735 = vmatprep.mubr.bf16.mxu0 0
    %736 = vmatmul.mubr.bf16.gmra.mrb[0].mxu0 %v701
    %v737 = vpop.f32.mrb[0].mxu0
    %v738 = vadd.f32 0.0, %v737
    %v739 = vpop.f32.mrb[0].mxu0
    %v740 = vpop.f32.mrb[0].mxu0
    %v741 = vpop.f32.mrb[0].mxu0
    %742 = vdwg.mxu0
    %v747 = vunpack.c.l.b16 %v677
    %v748 = vunpack.c.l.b16 %v678
    %v749 = vunpack.c.l.b16 %v679
    %v750 = vunpack.c.l.b16 %v680
    %v751 = vpack.c.b16 %v748, %v747
    %v752 = vpack.c.b16 %v750, %v749
    %v756 = vsel %vm699, %v676, 0
    %758 = vmatprep.subr.bf16.mxu0 0
    %759 = vmatpush1.bf16.msra.mxu0 %v751
    %760 = vmatprep.subr.bf16.mxu0 0
    %761 = vmatpush1.bf16.msra.mxu0 %v752
    %762 = vmatprep.subr.bf16.mxu0 0
    %763 = vmatpush1.bf16.msra.mxu0 0
    %764 = vmatprep.subr.bf16.mxu0 0
    %765 = vmatpush1.bf16.msra.mxu0 0
    %766 = vmatprep.subr.bf16.mxu0 0
    %767 = vmatpush1.bf16.msra.mxu0 0
    %768 = vmatprep.subr.bf16.mxu0 0
    %769 = vmatpush1.bf16.msra.mxu0 0
    %770 = vmatprep.subr.bf16.mxu0 0
    %771 = vmatpush1.bf16.msra.mxu0 0
    %772 = vmatprep.subr.bf16.mxu0 0
    %773 = vmatpush1.bf16.msra.mxu0 0
    %774 = vmatprep.subr.bf16.mxu0 0
    %775 = vmatpush1.bf16.msra.mxu0 0
    %776 = vmatprep.subr.bf16.mxu0 0
    %777 = vmatpush1.bf16.msra.mxu0 0
    %778 = vmatprep.subr.bf16.mxu0 0
    %779 = vmatpush1.bf16.msra.mxu0 0
    %780 = vmatprep.subr.bf16.mxu0 0
    %781 = vmatpush1.bf16.msra.mxu0 0
    %782 = vmatprep.subr.bf16.mxu0 0
    %783 = vmatpush1.bf16.msra.mxu0 0
    %784 = vmatprep.subr.bf16.mxu0 0
    %785 = vmatpush1.bf16.msra.mxu0 0
    %786 = vmatprep.subr.bf16.mxu0 0
    %787 = vmatpush1.bf16.msra.mxu0 0
    %788 = vmatprep.subr.bf16.mxu0 0
    %789 = vmatpush1.bf16.msra.mxu0 0
    %790 = vmatprep.mubr.bf16.mxu0 0
    %791 = vmatmul.mubr.bf16.gmra.mrb[0].mxu0 %v756
    %v792 = vpop.f32.mrb[0].mxu0
    %v793 = vadd.f32 %v738, %v792
    %v794 = vpop.f32.mrb[0].mxu0
    %v795 = vpop.f32.mrb[0].mxu0
    %v796 = vpop.f32.mrb[0].mxu0
    %797 = vdwg.mxu0
    %v798 = vpack.c.bf16 %v645, %v645
    %s799 = scalar_lea.vmem [#allocation7], 32
    %v800 = vld [vmem:[%s799] sm:$0xf]
    %v801 = vld [vmem:[%s799 + $0x4] sm:$0xf]
    %v802 = vld [vmem:[%s799 + $0x8] sm:$0xf]
    %v803 = vld [vmem:[%s799 + $0xc] sm:$0xf]
    %v808 = vunpack.c.l.b16 %v800
    %v809 = vunpack.c.l.b16 %v801
    %v810 = vunpack.c.l.b16 %v802
    %v811 = vunpack.c.l.b16 %v803
    %v812 = vpack.c.b16 %v809, %v808
    %v813 = vpack.c.b16 %v811, %v810
    %v817 = vsel %vm699, %v798, 0
    %819 = vmatprep.subr.bf16.mxu0 0
    %820 = vmatpush1.bf16.msra.mxu0 %v812
    %821 = vmatprep.subr.bf16.mxu0 0
    %822 = vmatpush1.bf16.msra.mxu0 %v813
    %823 = vmatprep.subr.bf16.mxu0 0
    %824 = vmatpush1.bf16.msra.mxu0 0
    %825 = vmatprep.subr.bf16.mxu0 0
    %826 = vmatpush1.bf16.msra.mxu0 0
    %827 = vmatprep.subr.bf16.mxu0 0
    %828 = vmatpush1.bf16.msra.mxu0 0
    %829 = vmatprep.subr.bf16.mxu0 0
    %830 = vmatpush1.bf16.msra.mxu0 0
    %831 = vmatprep.subr.bf16.mxu0 0
    %832 = vmatpush1.bf16.msra.mxu0 0
    %833 = vmatprep.subr.bf16.mxu0 0
    %834 = vmatpush1.bf16.msra.mxu0 0
    %835 = vmatprep.subr.bf16.mxu0 0
    %836 = vmatpush1.bf16.msra.mxu0 0
    %837 = vmatprep.subr.bf16.mxu0 0
    %838 = vmatpush1.bf16.msra.mxu0 0
    %839 = vmatprep.subr.bf16.mxu0 0
    %840 = vmatpush1.bf16.msra.mxu0 0
    %841 = vmatprep.subr.bf16.mxu0 0
    %842 = vmatpush1.bf16.msra.mxu0 0
    %843 = vmatprep.subr.bf16.mxu0 0
    %844 = vmatpush1.bf16.msra.mxu0 0
    %845 = vmatprep.subr.bf16.mxu0 0
    %846 = vmatpush1.bf16.msra.mxu0 0
    %847 = vmatprep.subr.bf16.mxu0 0
    %848 = vmatpush1.bf16.msra.mxu0 0
    %849 = vmatprep.subr.bf16.mxu0 0
    %850 = vmatpush1.bf16.msra.mxu0 0
    %851 = vmatprep.mubr.bf16.mxu0 0
    %852 = vmatmul.mubr.bf16.gmra.mrb[0].mxu0 %v817
    %v853 = vpop.f32.mrb[0].mxu0
    %v854 = vadd.f32 0.0, %v853
    %v855 = vpop.f32.mrb[0].mxu0
    %v856 = vpop.f32.mrb[0].mxu0
    %v857 = vpop.f32.mrb[0].mxu0
    %858 = vdwg.mxu0
    %v859 = vadd.f32 %v793, %v854
    %v860 = vpack.c.bf16 %v650, %v650
    %s861 = scalar_lea.vmem [#allocation7], 48
    %v862 = vld [vmem:[%s861] sm:$0xf]
    %v863 = vld [vmem:[%s861 + $0x4] sm:$0xf]
    %v864 = vld [vmem:[%s861 + $0x8] sm:$0xf]
    %v865 = vld [vmem:[%s861 + $0xc] sm:$0xf]
    %v870 = vunpack.c.l.b16 %v862
    %v871 = vunpack.c.l.b16 %v863
    %v872 = vunpack.c.l.b16 %v864
    %v873 = vunpack.c.l.b16 %v865
    %v874 = vpack.c.b16 %v871, %v870
    %v875 = vpack.c.b16 %v873, %v872
    %v879 = vsel %vm699, %v860, 0
    %881 = vmatprep.subr.bf16.mxu0 0
    %882 = vmatpush1.bf16.msra.mxu0 %v874
    %883 = vmatprep.subr.bf16.mxu0 0
    %884 = vmatpush1.bf16.msra.mxu0 %v875
    %885 = vmatprep.subr.bf16.mxu0 0
    %886 = vmatpush1.bf16.msra.mxu0 0
    %887 = vmatprep.subr.bf16.mxu0 0
    %888 = vmatpush1.bf16.msra.mxu0 0
    %889 = vmatprep.subr.bf16.mxu0 0
    %890 = vmatpush1.bf16.msra.mxu0 0
    %891 = vmatprep.subr.bf16.mxu0 0
    %892 = vmatpush1.bf16.msra.mxu0 0
    %893 = vmatprep.subr.bf16.mxu0 0
    %894 = vmatpush1.bf16.msra.mxu0 0
    %895 = vmatprep.subr.bf16.mxu0 0
    %896 = vmatpush1.bf16.msra.mxu0 0
    %897 = vmatprep.subr.bf16.mxu0 0
    %898 = vmatpush1.bf16.msra.mxu0 0
    %899 = vmatprep.subr.bf16.mxu0 0
    %900 = vmatpush1.bf16.msra.mxu0 0
    %901 = vmatprep.subr.bf16.mxu0 0
    %902 = vmatpush1.bf16.msra.mxu0 0
    %903 = vmatprep.subr.bf16.mxu0 0
    %904 = vmatpush1.bf16.msra.mxu0 0
    %905 = vmatprep.subr.bf16.mxu0 0
    %906 = vmatpush1.bf16.msra.mxu0 0
    %907 = vmatprep.subr.bf16.mxu0 0
    %908 = vmatpush1.bf16.msra.mxu0 0
    %909 = vmatprep.subr.bf16.mxu0 0
    %910 = vmatpush1.bf16.msra.mxu0 0
    %911 = vmatprep.subr.bf16.mxu0 0
    %912 = vmatpush1.bf16.msra.mxu0 0
    %913 = vmatprep.mubr.bf16.mxu0 0
    %914 = vmatmul.mubr.bf16.gmra.mrb[0].mxu0 %v879
    %v915 = vpop.f32.mrb[0].mxu0
    %v916 = vadd.f32 0.0, %v915
    %v917 = vpop.f32.mrb[0].mxu0
    %v918 = vpop.f32.mrb[0].mxu0
    %v919 = vpop.f32.mrb[0].mxu0
    %920 = vdwg.mxu0
    %v921 = vadd.f32 %v859, %v916
    %v922 = vpack.c.bf16 %v655, %v655
    %s923 = scalar_lea.vmem [#allocation7], 64
    %v924 = vld [vmem:[%s923] sm:$0xf]
    %v925 = vld [vmem:[%s923 + $0x4] sm:$0xf]
    %v926 = vld [vmem:[%s923 + $0x8] sm:$0xf]
    %v927 = vld [vmem:[%s923 + $0xc] sm:$0xf]
    %v932 = vunpack.c.l.b16 %v924
    %v933 = vunpack.c.l.b16 %v925
    %v934 = vunpack.c.l.b16 %v926
    %v935 = vunpack.c.l.b16 %v927
    %v936 = vpack.c.b16 %v933, %v932
    %v937 = vpack.c.b16 %v935, %v934
    %v941 = vsel %vm699, %v922, 0
    %943 = vmatprep.subr.bf16.mxu0 0
    %944 = vmatpush1.bf16.msra.mxu0 %v936
    %945 = vmatprep.subr.bf16.mxu0 0
    %946 = vmatpush1.bf16.msra.mxu0 %v937
    %947 = vmatprep.subr.bf16.mxu0 0
    %948 = vmatpush1.bf16.msra.mxu0 0
    %949 = vmatprep.subr.bf16.mxu0 0
    %950 = vmatpush1.bf16.msra.mxu0 0
    %951 = vmatprep.subr.bf16.mxu0 0
    %952 = vmatpush1.bf16.msra.mxu0 0
    %953 = vmatprep.subr.bf16.mxu0 0
    %954 = vmatpush1.bf16.msra.mxu0 0
    %955 = vmatprep.subr.bf16.mxu0 0
    %956 = vmatpush1.bf16.msra.mxu0 0
    %957 = vmatprep.subr.bf16.mxu0 0
    %958 = vmatpush1.bf16.msra.mxu0 0
    %959 = vmatprep.subr.bf16.mxu0 0
    %960 = vmatpush1.bf16.msra.mxu0 0
    %961 = vmatprep.subr.bf16.mxu0 0
    %962 = vmatpush1.bf16.msra.mxu0 0
    %963 = vmatprep.subr.bf16.mxu0 0
    %964 = vmatpush1.bf16.msra.mxu0 0
    %965 = vmatprep.subr.bf16.mxu0 0
    %966 = vmatpush1.bf16.msra.mxu0 0
    %967 = vmatprep.subr.bf16.mxu0 0
    %968 = vmatpush1.bf16.msra.mxu0 0
    %969 = vmatprep.subr.bf16.mxu0 0
    %970 = vmatpush1.bf16.msra.mxu0 0
    %971 = vmatprep.subr.bf16.mxu0 0
    %972 = vmatpush1.bf16.msra.mxu0 0
    %973 = vmatprep.subr.bf16.mxu0 0
    %974 = vmatpush1.bf16.msra.mxu0 0
    %975 = vmatprep.mubr.bf16.mxu0 0
    %976 = vmatmul.mubr.bf16.gmra.mrb[0].mxu0 %v941
    %v977 = vpop.f32.mrb[0].mxu0
    %v978 = vadd.f32 0.0, %v977
    %v979 = vpop.f32.mrb[0].mxu0
    %v980 = vpop.f32.mrb[0].mxu0
    %v981 = vpop.f32.mrb[0].mxu0
    %982 = vdwg.mxu0
    %v983 = vadd.f32 %v921, %v978
    %v984 = vpack.c.bf16 %v660, %v660
    %s985 = scalar_lea.vmem [#allocation7], 80
    %v986 = vld [vmem:[%s985] sm:$0xf]
    %v987 = vld [vmem:[%s985 + $0x4] sm:$0xf]
    %v988 = vld [vmem:[%s985 + $0x8] sm:$0xf]
    %v989 = vld [vmem:[%s985 + $0xc] sm:$0xf]
    %v994 = vunpack.c.l.b16 %v986
    %v995 = vunpack.c.l.b16 %v987
    %v996 = vunpack.c.l.b16 %v988
    %v997 = vunpack.c.l.b16 %v989
    %v998 = vpack.c.b16 %v995, %v994
    %v999 = vpack.c.b16 %v997, %v996
    %v1003 = vsel %vm699, %v984, 0
    %1005 = vmatprep.subr.bf16.mxu0 0
    %1006 = vmatpush1.bf16.msra.mxu0 %v998
    %1007 = vmatprep.subr.bf16.mxu0 0
    %1008 = vmatpush1.bf16.msra.mxu0 %v999
    %1009 = vmatprep.subr.bf16.mxu0 0
    %1010 = vmatpush1.bf16.msra.mxu0 0
    %1011 = vmatprep.subr.bf16.mxu0 0
    %1012 = vmatpush1.bf16.msra.mxu0 0
    %1013 = vmatprep.subr.bf16.mxu0 0
    %1014 = vmatpush1.bf16.msra.mxu0 0
    %1015 = vmatprep.subr.bf16.mxu0 0
    %1016 = vmatpush1.bf16.msra.mxu0 0
    %1017 = vmatprep.subr.bf16.mxu0 0
    %1018 = vmatpush1.bf16.msra.mxu0 0
    %1019 = vmatprep.subr.bf16.mxu0 0
    %1020 = vmatpush1.bf16.msra.mxu0 0
    %1021 = vmatprep.subr.bf16.mxu0 0
    %1022 = vmatpush1.bf16.msra.mxu0 0
    %1023 = vmatprep.subr.bf16.mxu0 0
    %1024 = vmatpush1.bf16.msra.mxu0 0
    %1025 = vmatprep.subr.bf16.mxu0 0
    %1026 = vmatpush1.bf16.msra.mxu0 0
    %1027 = vmatprep.subr.bf16.mxu0 0
    %1028 = vmatpush1.bf16.msra.mxu0 0
    %1029 = vmatprep.subr.bf16.mxu0 0
    %1030 = vmatpush1.bf16.msra.mxu0 0
    %1031 = vmatprep.subr.bf16.mxu0 0
    %1032 = vmatpush1.bf16.msra.mxu0 0
    %1033 = vmatprep.subr.bf16.mxu0 0
    %1034 = vmatpush1.bf16.msra.mxu0 0
    %1035 = vmatprep.subr.bf16.mxu0 0
    %1036 = vmatpush1.bf16.msra.mxu0 0
    %1037 = vmatprep.mubr.bf16.mxu0 0
    %1038 = vmatmul.mubr.bf16.gmra.mrb[0].mxu0 %v1003
    %v1039 = vpop.f32.mrb[0].mxu0
    %v1040 = vadd.f32 0.0, %v1039
    %v1041 = vpop.f32.mrb[0].mxu0
    %v1042 = vpop.f32.mrb[0].mxu0
    %v1043 = vpop.f32.mrb[0].mxu0
    %1044 = vdwg.mxu0
    %v1045 = vadd.f32 %v983, %v1040
    %v1046 = vpack.c.bf16 %v665, %v665
    %s1047 = scalar_lea.vmem [#allocation7], 96
    %v1048 = vld [vmem:[%s1047] sm:$0xf]
    %v1049 = vld [vmem:[%s1047 + $0x4] sm:$0xf]
    %v1050 = vld [vmem:[%s1047 + $0x8] sm:$0xf]
    %v1051 = vld [vmem:[%s1047 + $0xc] sm:$0xf]
    %v1056 = vunpack.c.l.b16 %v1048
    %v1057 = vunpack.c.l.b16 %v1049
    %v1058 = vunpack.c.l.b16 %v1050
    %v1059 = vunpack.c.l.b16 %v1051
    %v1060 = vpack.c.b16 %v1057, %v1056
    %v1061 = vpack.c.b16 %v1059, %v1058
    %v1065 = vsel %vm699, %v1046, 0
    %1067 = vmatprep.subr.bf16.mxu0 0
    %1068 = vmatpush1.bf16.msra.mxu0 %v1060
    %1069 = vmatprep.subr.bf16.mxu0 0
    %1070 = vmatpush1.bf16.msra.mxu0 %v1061
    %1071 = vmatprep.subr.bf16.mxu0 0
    %1072 = vmatpush1.bf16.msra.mxu0 0
    %1073 = vmatprep.subr.bf16.mxu0 0
    %1074 = vmatpush1.bf16.msra.mxu0 0
    %1075 = vmatprep.subr.bf16.mxu0 0
    %1076 = vmatpush1.bf16.msra.mxu0 0
    %1077 = vmatprep.subr.bf16.mxu0 0
    %1078 = vmatpush1.bf16.msra.mxu0 0
    %1079 = vmatprep.subr.bf16.mxu0 0
    %1080 = vmatpush1.bf16.msra.mxu0 0
    %1081 = vmatprep.subr.bf16.mxu0 0
    %1082 = vmatpush1.bf16.msra.mxu0 0
    %1083 = vmatprep.subr.bf16.mxu0 0
    %1084 = vmatpush1.bf16.msra.mxu0 0
    %1085 = vmatprep.subr.bf16.mxu0 0
    %1086 = vmatpush1.bf16.msra.mxu0 0
    %1087 = vmatprep.subr.bf16.mxu0 0
    %1088 = vmatpush1.bf16.msra.mxu0 0
    %1089 = vmatprep.subr.bf16.mxu0 0
    %1090 = vmatpush1.bf16.msra.mxu0 0
    %1091 = vmatprep.subr.bf16.mxu0 0
    %1092 = vmatpush1.bf16.msra.mxu0 0
    %1093 = vmatprep.subr.bf16.mxu0 0
    %1094 = vmatpush1.bf16.msra.mxu0 0
    %1095 = vmatprep.subr.bf16.mxu0 0
    %1096 = vmatpush1.bf16.msra.mxu0 0
    %1097 = vmatprep.subr.bf16.mxu0 0
    %1098 = vmatpush1.bf16.msra.mxu0 0
    %1099 = vmatprep.mubr.bf16.mxu0 0
    %1100 = vmatmul.mubr.bf16.gmra.mrb[0].mxu0 %v1065
    %v1101 = vpop.f32.mrb[0].mxu0
    %v1102 = vadd.f32 0.0, %v1101
    %v1103 = vpop.f32.mrb[0].mxu0
    %v1104 = vpop.f32.mrb[0].mxu0
    %v1105 = vpop.f32.mrb[0].mxu0
    %1106 = vdwg.mxu0
    %v1107 = vadd.f32 %v1045, %v1102
    %v1108 = vpack.c.bf16 %v670, %v670
    %s1109 = scalar_lea.vmem [#allocation7], 112
    %v1110 = vld [vmem:[%s1109] sm:$0xf]
    %v1111 = vld [vmem:[%s1109 + $0x4] sm:$0xf]
    %v1112 = vld [vmem:[%s1109 + $0x8] sm:$0xf]
    %v1113 = vld [vmem:[%s1109 + $0xc] sm:$0xf]
    %v1118 = vunpack.c.l.b16 %v1110
    %v1119 = vunpack.c.l.b16 %v1111
    %v1120 = vunpack.c.l.b16 %v1112
    %v1121 = vunpack.c.l.b16 %v1113
    %v1122 = vpack.c.b16 %v1119, %v1118
    %v1123 = vpack.c.b16 %v1121, %v1120
    %v1127 = vsel %vm699, %v1108, 0
    %1129 = vmatprep.subr.bf16.mxu0 0
    %1130 = vmatpush1.bf16.msra.mxu0 %v1122
    %1131 = vmatprep.subr.bf16.mxu0 0
    %1132 = vmatpush1.bf16.msra.mxu0 %v1123
    %1133 = vmatprep.subr.bf16.mxu0 0
    %1134 = vmatpush1.bf16.msra.mxu0 0
    %1135 = vmatprep.subr.bf16.mxu0 0
    %1136 = vmatpush1.bf16.msra.mxu0 0
    %1137 = vmatprep.subr.bf16.mxu0 0
    %1138 = vmatpush1.bf16.msra.mxu0 0
    %1139 = vmatprep.subr.bf16.mxu0 0
    %1140 = vmatpush1.bf16.msra.mxu0 0
    %1141 = vmatprep.subr.bf16.mxu0 0
    %1142 = vmatpush1.bf16.msra.mxu0 0
    %1143 = vmatprep.subr.bf16.mxu0 0
    %1144 = vmatpush1.bf16.msra.mxu0 0
    %1145 = vmatprep.subr.bf16.mxu0 0
    %1146 = vmatpush1.bf16.msra.mxu0 0
    %1147 = vmatprep.subr.bf16.mxu0 0
    %1148 = vmatpush1.bf16.msra.mxu0 0
    %1149 = vmatprep.subr.bf16.mxu0 0
    %1150 = vmatpush1.bf16.msra.mxu0 0
    %1151 = vmatprep.subr.bf16.mxu0 0
    %1152 = vmatpush1.bf16.msra.mxu0 0
    %1153 = vmatprep.subr.bf16.mxu0 0
    %1154 = vmatpush1.bf16.msra.mxu0 0
    %1155 = vmatprep.subr.bf16.mxu0 0
    %1156 = vmatpush1.bf16.msra.mxu0 0
    %1157 = vmatprep.subr.bf16.mxu0 0
    %1158 = vmatpush1.bf16.msra.mxu0 0
    %1159 = vmatprep.subr.bf16.mxu0 0
    %1160 = vmatpush1.bf16.msra.mxu0 0
    %1161 = vmatprep.mubr.bf16.mxu0 0
    %1162 = vmatmul.mubr.bf16.gmra.mrb[0].mxu0 %v1127
    %v1163 = vpop.f32.mrb[0].mxu0
    %v1164 = vadd.f32 0.0, %v1163
    %v1165 = vpop.f32.mrb[0].mxu0
    %v1166 = vpop.f32.mrb[0].mxu0
    %v1167 = vpop.f32.mrb[0].mxu0
    %1168 = vdwg.mxu0
    %v1169 = vadd.f32 %v1107, %v1164
    %v1170 = vpack.c.bf16 %v675, %v675
    %s1171 = scalar_lea.vmem [#allocation7], 128
    %v1172 = vld [vmem:[%s1171] sm:$0xf]
    %v1173 = vld [vmem:[%s1171 + $0x4] sm:$0xf]
    %v1174 = vld [vmem:[%s1171 + $0x8] sm:$0xf]
    %v1175 = vld [vmem:[%s1171 + $0xc] sm:$0xf]
    %v1180 = vunpack.c.l.b16 %v1172
    %v1181 = vunpack.c.l.b16 %v1173
    %v1182 = vunpack.c.l.b16 %v1174
    %v1183 = vunpack.c.l.b16 %v1175
    %v1184 = vpack.c.b16 %v1181, %v1180
    %v1185 = vpack.c.b16 %v1183, %v1182
    %v1189 = vsel %vm699, %v1170, 0
    %1191 = vmatprep.subr.bf16.mxu0 0
    %1192 = vmatpush1.bf16.msra.mxu0 %v1184
    %1193 = vmatprep.subr.bf16.mxu0 0
    %1194 = vmatpush1.bf16.msra.mxu0 %v1185
    %1195 = vmatprep.subr.bf16.mxu0 0
    %1196 = vmatpush1.bf16.msra.mxu0 0
    %1197 = vmatprep.subr.bf16.mxu0 0
    %1198 = vmatpush1.bf16.msra.mxu0 0
    %1199 = vmatprep.subr.bf16.mxu0 0
    %1200 = vmatpush1.bf16.msra.mxu0 0
    %1201 = vmatprep.subr.bf16.mxu0 0
    %1202 = vmatpush1.bf16.msra.mxu0 0
    %1203 = vmatprep.subr.bf16.mxu0 0
    %1204 = vmatpush1.bf16.msra.mxu0 0
    %1205 = vmatprep.subr.bf16.mxu0 0
    %1206 = vmatpush1.bf16.msra.mxu0 0
    %1207 = vmatprep.subr.bf16.mxu0 0
    %1208 = vmatpush1.bf16.msra.mxu0 0
    %1209 = vmatprep.subr.bf16.mxu0 0
    %1210 = vmatpush1.bf16.msra.mxu0 0
    %1211 = vmatprep.subr.bf16.mxu0 0
    %1212 = vmatpush1.bf16.msra.mxu0 0
    %1213 = vmatprep.subr.bf16.mxu0 0
    %1214 = vmatpush1.bf16.msra.mxu0 0
    %1215 = vmatprep.subr.bf16.mxu0 0
    %1216 = vmatpush1.bf16.msra.mxu0 0
    %1217 = vmatprep.subr.bf16.mxu0 0
    %1218 = vmatpush1.bf16.msra.mxu0 0
    %1219 = vmatprep.subr.bf16.mxu0 0
    %1220 = vmatpush1.bf16.msra.mxu0 0
    %1221 = vmatprep.subr.bf16.mxu0 0
    %1222 = vmatpush1.bf16.msra.mxu0 0
    %1223 = vmatprep.mubr.bf16.mxu0 0
    %1224 = vmatmul.mubr.bf16.gmra.mrb[0].mxu0 %v1189
    %v1225 = vpop.f32.mrb[0].mxu0
    %v1226 = vadd.f32 0.0, %v1225
    %v1227 = vpop.f32.mrb[0].mxu0
    %v1228 = vpop.f32.mrb[0].mxu0
    %v1229 = vpop.f32.mrb[0].mxu0
    %1230 = vdwg.mxu0
    %v1231 = vadd.f32 %v1169, %v1226
    %1232 = vst.msk [vmem:[#allocation8] sm:$0xff] %vm699, %v1231
    // Predicated region
    $region26: #{tpu_custom_call.1} parent=1 // pred_check
      _
    $region27: #{tpu_custom_call.1} parent=1 // pred_check_branch
      %1234 = sbr.rel (0) target = $region29
    $region28: #{tpu_custom_call.1} parent=1 // pred_region
      %s1236 = ssub.s32 128, 128
      %1237 = vsyncadd [#allocation4], %s1236
      %s1239 = sshll.u32 [#allocation8], 4
      %s1240 = int_to_ptr.vmem [resolvable:$true] %s1239
      %1242 = dma.vmem_to_hbm [thread:$0]  %s1240, 128, %s3, [#allocation4]
    $region29: #{tpu_custom_call.1} parent=1 // pred_fallthru
      _
    // Predicated region
    $region30: #{tpu_custom_call.1} parent=1 // pred_check
      _
    $region31: #{tpu_custom_call.1} parent=1 // pred_check_branch
      %1244 = sbr.rel (0) target = $region33
    $region32: #{tpu_custom_call.1} parent=1 // pred_region
      %1245 = dma.done [#allocation4], 128
    $region33: #{tpu_custom_call.1} parent=1 // pred_fallthru
      _
    %1246 = vsyncpa [#allocation3], 1
    %1247 = vsyncpa [#allocation6], 1
    %1248 = vsyncpa [#allocation4], 1

</llo_original>
